<compile_context>
chip_gen: v7x
topology: tpu7x:2x2x1
jax: 0.10.0
libtpu: 0.0.40
codegen_flags: <defaults>
</compile_context>

<pallas_src>
import functools

import jax
import jax.numpy as jnp
from jax.experimental import pallas as pl
from jax.experimental.pallas import tpu as pltpu


def _round_up(x, m):
    return ((x + m - 1) // m) * m


def _pad_to(x, shape):
    if tuple(x.shape) == tuple(shape):
        return x
    return jnp.pad(x, [(0, s - d) for d, s in zip(x.shape, shape)])


@functools.lru_cache(maxsize=None)
def _vmem_budget_and_limit():
    """Generation-aware VMEM sizing: bigger tiles on v5e/v6e (128 MiB VMEM),
    conservative on v7x (64 MiB).  Falls back to the v7x numbers if the
    hardware query is unavailable."""
    cap = 64 * 1024 * 1024
    try:
        info = pltpu.get_tpu_info()
        cap = int(getattr(info, "vmem_capacity_bytes", cap))
    except Exception:
        pass
    limit = min((cap * 3) // 4, 100 * 1024 * 1024)   # scoped-VMEM limit
    budget = max(12 * 1024 * 1024, limit // 2)       # stage-1 working-set cap
    return budget, limit


# ---------------------------------------------------------------------------
# Kernel 1: attention pooling, tiled over (batch-block, time), online softmax
# ---------------------------------------------------------------------------
def attention_pool_kernel(
    x_ref,      # (bb, bt, Hp)  features tile (f32; cast to bf16 in-kernel)
    w1_ref,     # (Hp, Hp)      Linear-1 weight (in,out)   (matmul dtype)
    b1_ref,     # (1, Hp)       Linear-1 bias              (f32)
    w2_ref,     # (1, Hp)       Linear-2 weight as a row   (f32)
    b2_ref,     # (1,)          Linear-2 bias   [SMEM scalar]
    emb_ref,    # (bb, Hp)      pooled embeddings (f32) -- written at last t
    m_sc,       # (bb, 1)       running max           (f32 scratch)
    l_sc,       # (bb, 1)       running sum           (f32 scratch)
    acc_sc,     # (bb, Hp)      running weighted sum  (f32 scratch)
    *,
    t_actual,   # real (unpadded) sequence length
    block_t,    # time tile size
    approx_recip,
    mask_time,  # static: True only when T was padded (ragged last tile)
):
    t_idx = pl.program_id(1)

    @pl.when(t_idx == 0)
    def _():
        m_sc[...] = jnp.full(m_sc.shape, -1e30, m_sc.dtype)
        l_sc[...] = jnp.zeros_like(l_sc)
        acc_sc[...] = jnp.zeros_like(acc_sc)

    bb, bt, hp = x_ref.shape
    x = x_ref[...]                                        # (bb, bt, hp) f32

    # Linear(H,H) + tanh on the MXU (bf16 inputs, f32 accumulation).  The
    # reshape is layout-preserving: hp % 128 == 0 and bt is sublane aligned.
    h = jnp.tanh(
        jnp.dot(x.astype(w1_ref.dtype).reshape(bb * bt, hp), w1_ref[...],
                preferred_element_type=jnp.float32)
        + b1_ref[...]
    ).reshape(bb, bt, hp)                                 # f32

    # Linear(H,1) score as VPU multiply + lane reduction (a 1-wide MXU output
    # would waste >99% of a matmul pass).
    s = jnp.sum(h * w2_ref[...], axis=-1) + b2_ref[0]     # (bb, bt) f32

    if mask_time:
        # Only emitted when T was padded; interior tiles pay the iota+where
        # too, but this path is skipped entirely for aligned T.
        t0 = t_idx * block_t
        tids = t0 + jax.lax.broadcasted_iota(jnp.int32, (bb, bt), 1)
        s = jnp.where(tids < t_actual, s, -1e30)

    # Online softmax update (all f32).
    m_prev = m_sc[...]                                    # (bb, 1)
    m_new = jnp.maximum(m_prev, jnp.max(s, axis=-1, keepdims=True))
    alpha = jnp.exp(m_prev - m_new)                       # (bb, 1)
    p = jnp.exp(s - m_new)                                # (bb, bt) f32

    l_sc[...] = alpha * l_sc[...] + jnp.sum(p, axis=-1, keepdims=True)

    # Weighted time-sum on the VPU: broadcast-multiply + sublane (time axis)
    # reduction, fully in f32.  This frees the MXU (which was restaging a
    # distinct (bt,hp) RHS per batch row for a single output row) and removes
    # the bf16 cast of the softmax weights.
    upd = jnp.sum(p[:, :, None] * x, axis=1)              # (bb, hp) f32
    acc_sc[...] = alpha * acc_sc[...] + upd
    m_sc[...] = m_new

    @pl.when(t_idx == pl.num_programs(1) - 1)
    def _():
        inv_l = pl.reciprocal(l_sc[...], approx=approx_recip)
        emb_ref[...] = (acc_sc[...] * inv_l).astype(emb_ref.dtype)


# ---------------------------------------------------------------------------
# Kernel 2: projection  Linear -> BatchNorm1d (train-mode) -> PReLU -> Linear
# ---------------------------------------------------------------------------
def projection_kernel(
    emb_ref,    # (B, Hp)   pooled embeddings (f32)
    wp1_ref,    # (Hp, Hp)  Linear weight (in,out)  (matmul dtype)
    bp1_ref,    # (1, Hp)   Linear bias             (f32)
    gamma_ref,  # (1, Hp)   BatchNorm1d weight      (f32)
    beta_ref,   # (1, Hp)   BatchNorm1d bias        (f32)
    wp2_ref,    # (Hp, Ep)  Linear weight (in,out)  (matmul dtype)
    bp2_ref,    # (1, Ep)   Linear bias             (f32)
    alpha_ref,  # (1,)      PReLU slope  [SMEM scalar]
    out_ref,    # (B, Ep)
):
    emb = emb_ref[...]
    y = (
        jnp.dot(emb.astype(wp1_ref.dtype), wp1_ref[...],
                preferred_element_type=jnp.float32)
        + bp1_ref[...]
    )                                                     # (B, Hp) f32

    # BatchNorm1d with training-mode (biased) batch statistics, eps = 1e-5,
    # single pass over y via var = E[y^2] - mean^2.
    # TODO(synk): running_mean/running_var buffer update (and eval-mode
    # normalization) is not implemented; forward uses batch statistics only.
    mean = jnp.mean(y, axis=0, keepdims=True)
    var = jnp.maximum(jnp.mean(y * y, axis=0, keepdims=True) - mean * mean, 0.0)
    yn = (y - mean) * jax.lax.rsqrt(var + 1e-5)
    yn = yn * gamma_ref[...] + beta_ref[...]

    a = alpha_ref[0]
    yp = jnp.where(yn > 0, yn, a * yn)                    # PReLU

    out = (
        jnp.dot(yp.astype(wp2_ref.dtype), wp2_ref[...],
                preferred_element_type=jnp.float32)
        + bp2_ref[...]
    )
    out_ref[...] = out.astype(out_ref.dtype)
    # TODO(synk): for very large B, tile the two matmuls over a batch-parallel
    # grid with a two-pass batch-stats combine to use both v7x TensorCores.


# ---------------------------------------------------------------------------
# Wrapper
# ---------------------------------------------------------------------------
def _vmem_spec(shape):
    nd = len(shape)
    return pl.BlockSpec(shape, lambda i, _nd=nd: (0,) * _nd)


def _fit_block_t(block_t, block_b, hp, msz, t_align, budget_bytes):
    """Shrink the time tile until the per-step working set fits the
    generation-aware VMEM budget.  Counts the double-buffered f32 x tile plus
    ~4x (block_b*bt*hp*4) bytes of live f32-equivalent temporaries (the bf16
    copy, h, the h*w2 product and the p*x product) plus resident weights and
    Mosaic internal scratch."""
    def footprint(bt):
        x_tiles = 2 * block_b * bt * hp * 4          # double-buffered f32 x
        f32_tmp = 4 * block_b * bt * hp * 4          # live in-kernel temps
        weights = 2 * hp * hp * msz + 16 * hp * 4    # resident w1 (+ vectors)
        scratch = block_b * (hp + 2) * 4             # VMEM accumulators
        return x_tiles + f32_tmp + weights + scratch + (1 << 20)

    while block_t > t_align and footprint(block_t) > budget_bytes:
        block_t = max(t_align, _round_up(block_t // 2, t_align))
    return block_t


@functools.partial(
    jax.jit,
    static_argnames=("block_t", "block_b", "matmul_dtype", "approx_reciprocal"),
)
def speaker_encoder_forward(
    features,                     # (B, T, H) float32
    params,
    *,
    block_t=512,                  # max time tile; shrunk to the VMEM budget
    block_b=8,                    # batch tile ("parallel" grid axis)
    matmul_dtype=jnp.bfloat16,    # MXU input dtype (f32 accumulation)
    approx_reciprocal=True,
):
    B, T, H = features.shape
    E = params["wp2"].shape[1]
    msz = jnp.dtype(matmul_dtype).itemsize
    f32 = jnp.float32

    # Lane-align H and E to 128; sublane-align time tiles.
    Hp = _round_up(H, 128)
    Ep = _round_up(E, 128)
    t_align = max(8, 32 // msz)

    # Batch tiling: keep >= 2 "parallel" blocks whenever possible so the
    # second TensorCore on v7x actually gets work.
    B8 = _round_up(B, 8)
    block_b = max(8, _round_up(min(block_b, B8), 8))
    if B8 >= 16 and B8 // block_b < 2:
        block_b = _round_up((B8 + 1) // 2, 8)
    B_pad = _round_up(B, block_b)

    budget, vmem_limit = _vmem_budget_and_limit()
    block_t = _round_up(min(block_t, _round_up(T, t_align)), t_align)
    block_t = _fit_block_t(block_t, block_b, Hp, msz, t_align, budget)
    T_pad = _round_up(T, block_t)

    # x stays f32 in HBM and is cast to the matmul dtype per tile inside the
    # kernel; pad only when the shapes actually require it (no extra HBM pass
    # for the aligned H=1024 case).
    if (B_pad, T_pad, Hp) != (B, T, H):
        x_in = _pad_to(features.astype(f32), (B_pad, T_pad, Hp))
    else:
        x_in = features.astype(f32)

    # ---- weights/vectors (zero padding keeps padded lanes exactly 0) -------
    w1_p = _pad_to(params["w1"], (Hp, Hp)).astype(matmul_dtype)
    b1_p = _pad_to(params["b1"].reshape(1, H), (1, Hp)).astype(f32)
    w2_p = _pad_to(params["w2"].reshape(1, H), (1, Hp)).astype(f32)
    b2_p = params["b2"].reshape(1).astype(f32)

    wp1_p = _pad_to(params["wp1"], (Hp, Hp)).astype(matmul_dtype)
    bp1_p = _pad_to(params["bp1"].reshape(1, H), (1, Hp)).astype(f32)
    gamma_p = _pad_to(params["gamma"].reshape(1, H), (1, Hp)).astype(f32)
    beta_p = _pad_to(params["beta"].reshape(1, H), (1, Hp)).astype(f32)
    alpha_p = params["alpha"].reshape(1).astype(f32)
    wp2_p = _pad_to(params["wp2"], (Hp, Ep)).astype(matmul_dtype)
    bp2_p = _pad_to(params["bp2"].reshape(1, E), (1, Ep)).astype(f32)

    # ---- stage 1: attention pooling (tiled, online softmax) ----------------
    grid1 = (B_pad // block_b, T_pad // block_t)
    emb_pad = pl.pallas_call(
        functools.partial(
            attention_pool_kernel,
            t_actual=T,
            block_t=block_t,
            approx_recip=approx_reciprocal,
            mask_time=(T_pad != T),
        ),
        out_shape=jax.ShapeDtypeStruct((B_pad, Hp), f32),
        grid=grid1,
        in_specs=[
            pl.BlockSpec((block_b, block_t, Hp), lambda b, t: (b, t, 0)),
            pl.BlockSpec((Hp, Hp), lambda b, t: (0, 0)),   # VMEM-resident w1
            pl.BlockSpec((1, Hp), lambda b, t: (0, 0)),    # b1
            pl.BlockSpec((1, Hp), lambda b, t: (0, 0)),    # w2 row
            pl.BlockSpec(memory_space=pltpu.MemorySpace.SMEM),  # b2 scalar
        ],
        out_specs=pl.BlockSpec((block_b, Hp), lambda b, t: (b, 0)),
        scratch_shapes=[
            pltpu.VMEM((block_b, 1), f32),    # running max
            pltpu.VMEM((block_b, 1), f32),    # running sum
            pltpu.VMEM((block_b, Hp), f32),   # running weighted sum
        ],
        compiler_params=pltpu.CompilerParams(
            dimension_semantics=("parallel", "arbitrary"),
            vmem_limit_bytes=vmem_limit,
        ),
    )(x_in, w1_p, b1_p, w2_p, b2_p)

    # Drop padded batch rows BEFORE BatchNorm (stats must only see real rows).
    emb = emb_pad[:B]

    # ---- stage 2: projection + BatchNorm1d + PReLU + Linear ----------------
    out_pad = pl.pallas_call(
        projection_kernel,
        out_shape=jax.ShapeDtypeStruct((B, Ep), f32),
        grid=(1,),
        in_specs=[
            _vmem_spec((B, Hp)),
            _vmem_spec((Hp, Hp)),
            _vmem_spec((1, Hp)),
            _vmem_spec((1, Hp)),
            _vmem_spec((1, Hp)),
            _vmem_spec((Hp, Ep)),
            _vmem_spec((1, Ep)),
            pl.BlockSpec(memory_space=pltpu.MemorySpace.SMEM),  # PReLU slope
        ],
        out_specs=_vmem_spec((B, Ep)),
        compiler_params=pltpu.CompilerParams(
            dimension_semantics=("arbitrary",),
            vmem_limit_bytes=vmem_limit,
        ),
    )(emb, wp1_p, bp1_p, gamma_p, beta_p, wp2_p, bp2_p, alpha_p)

    return out_pad[:, :E]


# ---------------------------------------------------------------------------
# Deterministic parameter init (mirrors the PyTorch __init__)
# ---------------------------------------------------------------------------
def init_params(key, hidden_size, embedding_size):
    k1, k2, k3, k4, k5, k6 = jax.random.split(key, 6)
    H, E = hidden_size, embedding_size

    def xavier_uniform(k, fan_in, fan_out):
        bound = (6.0 / (fan_in + fan_out)) ** 0.5
        # PyTorch stores Linear weight as (out, in); return transposed (in, out).
        return jax.random.uniform(
            k, (fan_out, fan_in), jnp.float32, -bound, bound
        ).T

    return {
        # attention_pool: xavier_uniform weights, zero biases (per __init__)
        "w1": xavier_uniform(k1, H, H),                    # (H, H) = (in, out)
        "b1": jnp.zeros((H,), jnp.float32),
        "w2": xavier_uniform(k2, H, 1).reshape(H),         # Linear(H,1) as row
        "b2": jnp.zeros((), jnp.float32),
        # projection Linear layers: deterministic small random init
        "wp1": jax.random.normal(k3, (H, H), jnp.float32) * 0.05,
        "bp1": jax.random.normal(k4, (H,), jnp.float32) * 0.02,
        # BatchNorm1d affine params (default: weight=1, bias=0)
        "gamma": jnp.ones((H,), jnp.float32),
        "beta": jnp.zeros((H,), jnp.float32),
        # PReLU (default init: 0.25)
        "alpha": jnp.asarray(0.25, jnp.float32),
        "wp2": jax.random.normal(k5, (H, E), jnp.float32) * 0.05,
        "bp2": jax.random.normal(k6, (E,), jnp.float32) * 0.02,
    }


# Pure-JAX reference.  Matmul inputs get the same bf16 rounding as the
# kernel's MXU path (f32 accumulation); softmax and the weighted time-sum
# stay f32, matching the kernel's VPU weighted-sum path.
def reference_forward(x, p, matmul_dtype=jnp.bfloat16):
    B, T, H = x.shape
    md = matmul_dtype
    h = jnp.tanh(
        jnp.dot(x.astype(md).reshape(B * T, H), p["w1"].astype(md),
                preferred_element_type=jnp.float32) + p["b1"][None, :])
    s = (jnp.sum(h * p["w2"][None, :], axis=-1) + p["b2"]).reshape(B, T)
    w = jax.nn.softmax(s, axis=1)
    emb = jnp.einsum("bt,bth->bh", w, x)                   # f32
    y = jnp.dot(emb.astype(md), p["wp1"].astype(md),
                preferred_element_type=jnp.float32) + p["bp1"][None, :]
    mean = jnp.mean(y, axis=0, keepdims=True)
    var = jnp.mean(jnp.square(y - mean), axis=0, keepdims=True)
    yn = (y - mean) * jax.lax.rsqrt(var + 1e-5)
    yn = yn * p["gamma"][None, :] + p["beta"][None, :]
    yp = jnp.where(yn > 0, yn, p["alpha"] * yn)
    return jnp.dot(yp.astype(md), p["wp2"].astype(md),
                   preferred_element_type=jnp.float32) + p["bp2"][None, :]


if __name__ == "__main__":
    # Small shapes: batch=16, seq=20 (not a tile multiple -> exercises time
    # masking), hidden=32, embedding=16 (lane-padded to 128 in the wrapper).
    B, T, H, E = 16, 20, 32, 16

    key = jax.random.PRNGKey(0)
    kx, kp = jax.random.split(key)
    features = jax.random.normal(kx, (B, T, H), jnp.float32)
    params = init_params(kp, H, E)

    # block_t=16 / block_b=8 keeps multiple grid steps even at these tiny
    # shapes (grid = (2, 2)): exercises the online-softmax accumulator, the
    # masked final time tile and the 2-block parallel batch axis.
    out = speaker_encoder_forward(features, params, block_t=16, block_b=8)
    out = jax.block_until_ready(out)

    ref = reference_forward(features, params, matmul_dtype=jnp.bfloat16)
    assert out.shape == (B, E)
    # Tolerance notes: the kernel uses bf16 MXU inputs, an approximate EUP
    # reciprocal for the softmax denominator and an online (tiled) softmax;
    # the reference applies matching bf16 matmul-input rounding but not the
    # same accumulation order.  Typical max-abs-diff is ~1e-3.
    assert jnp.allclose(out, ref, rtol=2e-2, atol=2e-2), "mismatch vs reference"

    print("KERNEL_OK")
</pallas_src>

<mosaic_0001>
module attributes {stable_mosaic.version = 11 : i64} {
  func.func @attention_pool_kernel(%arg0: i32, %arg1: i32, %arg2: memref<8x16x128xf32, #tpu.memory_space<vmem>>, %arg3: memref<128x128xbf16, #tpu.memory_space<vmem>>, %arg4: memref<1x128xf32, #tpu.memory_space<vmem>>, %arg5: memref<1x128xf32, #tpu.memory_space<vmem>>, %arg6: memref<1xf32, #tpu.memory_space<smem>>, %arg7: memref<8x128xf32, #tpu.memory_space<vmem>>, %arg8: memref<8x1xf32, #tpu.memory_space<vmem>>, %arg9: memref<8x1xf32, #tpu.memory_space<vmem>>, %arg10: memref<8x128xf32, #tpu.memory_space<vmem>>) attributes {dimension_semantics = [#tpu.dimension_semantics<parallel>, #tpu.dimension_semantics<arbitrary>], iteration_bounds = array<i64: 2, 2>, scalar_prefetch = 0 : i64, scratch_operands = 3 : i64, tpu.core_type = #tpu.core_type<tc>, window_params = [{transform_indices = @transform_0, window_bounds = array<i64: 8, 16, 128>}, {pipeline_mode = #tpu.pipeline_mode<synchronous>, transform_indices = @transform_1, window_bounds = array<i64: 128, 128>}, {pipeline_mode = #tpu.pipeline_mode<synchronous>, transform_indices = @transform_2, window_bounds = array<i64: 1, 128>}, {pipeline_mode = #tpu.pipeline_mode<synchronous>, transform_indices = @transform_3, window_bounds = array<i64: 1, 128>}, {transform_indices = @transform_4, window_bounds = array<i64: 1>}, {transform_indices = @transform_5, window_bounds = array<i64: 8, 128>}]} {
    %c0_i32 = arith.constant 0 : i32
    %0 = arith.cmpi eq, %arg1, %c0_i32 : i32
    %1 = arith.extui %0 : i1 to i32
    %c0_i32_0 = arith.constant 0 : i32
    %2 = arith.cmpi ne, %1, %c0_i32_0 : i32
    scf.if %2 {
      %cst_28 = arith.constant -1.000000e+30 : f32
      %57 = vector.broadcast %cst_28 : f32 to vector<8x1xf32>
      %c0_29 = arith.constant 0 : index
      %c0_30 = arith.constant 0 : index
      %58 = vector.load %arg8[%c0_29, %c0_30] : memref<8x1xf32, #tpu.memory_space<vmem>>, vector<8x1xf32>
      tpu.vector_store %arg8[%c0_29, %c0_30], %57 {strides = array<i32>} : memref<8x1xf32, #tpu.memory_space<vmem>>, vector<8x1xf32>,
      %cst_31 = arith.constant 0.000000e+00 : f32
      %59 = vector.broadcast %cst_31 : f32 to vector<8x1xf32>
      %c0_32 = arith.constant 0 : index
      %c0_33 = arith.constant 0 : index
      %60 = vector.load %arg9[%c0_32, %c0_33] : memref<8x1xf32, #tpu.memory_space<vmem>>, vector<8x1xf32>
      tpu.vector_store %arg9[%c0_32, %c0_33], %59 {strides = array<i32>} : memref<8x1xf32, #tpu.memory_space<vmem>>, vector<8x1xf32>,
      %cst_34 = arith.constant 0.000000e+00 : f32
      %61 = vector.broadcast %cst_34 : f32 to vector<8x128xf32>
      %c0_35 = arith.constant 0 : index
      %c0_36 = arith.constant 0 : index
      %62 = vector.load %arg10[%c0_35, %c0_36] : memref<8x128xf32, #tpu.memory_space<vmem>>, vector<8x128xf32>
      tpu.vector_store %arg10[%c0_35, %c0_36], %61 {strides = array<i32>} : memref<8x128xf32, #tpu.memory_space<vmem>>, vector<8x128xf32>,
    } else {
    }
    %c0 = arith.constant 0 : index
    %c0_1 = arith.constant 0 : index
    %c0_2 = arith.constant 0 : index
    %3 = vector.load %arg2[%c0, %c0_1, %c0_2] : memref<8x16x128xf32, #tpu.memory_space<vmem>>, vector<8x16x128xf32>
    %4 = arith.truncf %3 : vector<8x16x128xf32> to vector<8x16x128xbf16>
    %5 = vector.shape_cast %4 : vector<8x16x128xbf16> to vector<128x128xbf16>
    %c0_3 = arith.constant 0 : index
    %c0_4 = arith.constant 0 : index
    %6 = vector.load %arg3[%c0_3, %c0_4] : memref<128x128xbf16, #tpu.memory_space<vmem>>, vector<128x128xbf16>
    %cst = arith.constant dense<0.000000e+00> : vector<128x128xf32>
    %7 = tpu.matmul %5, %6, %cst {dimension_numbers = #tpu.dot_dimension_numbers<[1], [0], [0], [1], [0, 0, 1, 1], [], []>} : vector<128x128xbf16>, vector<128x128xbf16>, vector<128x128xf32> -> vector<128x128xf32>
    %c0_5 = arith.constant 0 : index
    %c0_6 = arith.constant 0 : index
    %8 = vector.load %arg4[%c0_5, %c0_6] : memref<1x128xf32, #tpu.memory_space<vmem>>, vector<1x128xf32>
    %9 = vector.broadcast %8 : vector<1x128xf32> to vector<128x128xf32>
    %10 = arith.addf %7, %9 : vector<128x128xf32>
    %11 = math.tanh %10 : vector<128x128xf32>
    %12 = vector.shape_cast %11 : vector<128x128xf32> to vector<8x16x128xf32>
    %c0_7 = arith.constant 0 : index
    %c0_8 = arith.constant 0 : index
    %13 = vector.load %arg5[%c0_7, %c0_8] : memref<1x128xf32, #tpu.memory_space<vmem>>, vector<1x128xf32>
    %14 = vector.shape_cast %13 : vector<1x128xf32> to vector<1x1x128xf32>
    %15 = vector.broadcast %14 : vector<1x1x128xf32> to vector<8x16x128xf32>
    %16 = arith.mulf %12, %15 : vector<8x16x128xf32>
    %cst_9 = arith.constant dense<0.000000e+00> : vector<8x16xf32>
    %17 = vector.multi_reduction <add>, %16, %cst_9 [2] : vector<8x16x128xf32> to vector<8x16xf32>
    %c0_10 = arith.constant 0 : index
    %18 = memref.load %arg6[%c0_10] : memref<1xf32, #tpu.memory_space<smem>>
    %19 = vector.broadcast %18 : f32 to vector<8x16xf32>
    %20 = arith.addf %17, %19 : vector<8x16xf32>
    %c16_i32 = arith.constant 16 : i32
    %21 = arith.muli %arg1, %c16_i32 : i32
    %22 = tpu.iota {dimensions = array<i32: 1>} : vector<8x16xi32>
    %23 = vector.broadcast %21 : i32 to vector<8x16xi32>
    %24 = arith.addi %23, %22 : vector<8x16xi32>
    %c20_i32 = arith.constant 20 : i32
    %25 = vector.broadcast %c20_i32 : i32 to vector<8x16xi32>
    %26 = arith.cmpi slt, %24, %25 : vector<8x16xi32>
    %cst_11 = arith.constant -1.000000e+30 : f32
    %27 = vector.broadcast %cst_11 : f32 to vector<8x16xf32>
    %28 = arith.select %26, %20, %27 : vector<8x16xi1>, vector<8x16xf32>
    %c0_12 = arith.constant 0 : index
    %c0_13 = arith.constant 0 : index
    %29 = vector.load %arg8[%c0_12, %c0_13] : memref<8x1xf32, #tpu.memory_space<vmem>>, vector<8x1xf32>
    %cst_14 = arith.constant dense<0xFF800000> : vector<8xf32>
    %30 = vector.multi_reduction <maximumf>, %28, %cst_14 [1] : vector<8x16xf32> to vector<8xf32>
    %31 = vector.shape_cast %30 : vector<8xf32> to vector<8x1xf32>
    %32 = arith.maximumf %29, %31 : vector<8x1xf32>
    %33 = arith.subf %29, %32 : vector<8x1xf32>
    %34 = math.exp %33 : vector<8x1xf32>
    %35 = vector.broadcast %32 : vector<8x1xf32> to vector<8x16xf32>
    %36 = arith.subf %28, %35 : vector<8x16xf32>
    %37 = math.exp %36 : vector<8x16xf32>
    %c0_15 = arith.constant 0 : index
    %c0_16 = arith.constant 0 : index
    %38 = vector.load %arg9[%c0_15, %c0_16] : memref<8x1xf32, #tpu.memory_space<vmem>>, vector<8x1xf32>
    %39 = arith.mulf %34, %38 : vector<8x1xf32>
    %cst_17 = arith.constant dense<0.000000e+00> : vector<8xf32>
    %40 = vector.multi_reduction <add>, %37, %cst_17 [1] : vector<8x16xf32> to vector<8xf32>
    %41 = vector.shape_cast %40 : vector<8xf32> to vector<8x1xf32>
    %42 = arith.addf %39, %41 : vector<8x1xf32>
    %c0_18 = arith.constant 0 : index
    %c0_19 = arith.constant 0 : index
    %43 = vector.load %arg9[%c0_18, %c0_19] : memref<8x1xf32, #tpu.memory_space<vmem>>, vector<8x1xf32>
    tpu.vector_store %arg9[%c0_18, %c0_19], %42 {strides = array<i32>} : memref<8x1xf32, #tpu.memory_space<vmem>>, vector<8x1xf32>,
    %44 = vector.shape_cast %37 : vector<8x16xf32> to vector<8x16x1xf32>
    %45 = vector.broadcast %44 : vector<8x16x1xf32> to vector<8x16x128xf32>
    %46 = arith.mulf %45, %3 : vector<8x16x128xf32>
    %cst_20 = arith.constant dense<0.000000e+00> : vector<8x128xf32>
    %47 = vector.multi_reduction <add>, %46, %cst_20 [1] : vector<8x16x128xf32> to vector<8x128xf32>
    %c0_21 = arith.constant 0 : index
    %c0_22 = arith.constant 0 : index
    %48 = vector.load %arg10[%c0_21, %c0_22] : memref<8x128xf32, #tpu.memory_space<vmem>>, vector<8x128xf32>
    %49 = vector.broadcast %34 : vector<8x1xf32> to vector<8x128xf32>
    %50 = arith.mulf %49, %48 : vector<8x128xf32>
    %51 = arith.addf %50, %47 : vector<8x128xf32>
    %c0_23 = arith.constant 0 : index
    %c0_24 = arith.constant 0 : index
    %52 = vector.load %arg10[%c0_23, %c0_24] : memref<8x128xf32, #tpu.memory_space<vmem>>, vector<8x128xf32>
    tpu.vector_store %arg10[%c0_23, %c0_24], %51 {strides = array<i32>} : memref<8x128xf32, #tpu.memory_space<vmem>>, vector<8x128xf32>,
    %c0_25 = arith.constant 0 : index
    %c0_26 = arith.constant 0 : index
    %53 = vector.load %arg8[%c0_25, %c0_26] : memref<8x1xf32, #tpu.memory_space<vmem>>, vector<8x1xf32>
    tpu.vector_store %arg8[%c0_25, %c0_26], %32 {strides = array<i32>} : memref<8x1xf32, #tpu.memory_space<vmem>>, vector<8x1xf32>,
    %c1_i32 = arith.constant 1 : i32
    %54 = arith.cmpi eq, %arg1, %c1_i32 : i32
    %55 = arith.extui %54 : i1 to i32
    %c0_i32_27 = arith.constant 0 : i32
    %56 = arith.cmpi ne, %55, %c0_i32_27 : i32
    scf.if %56 {
      %c0_28 = arith.constant 0 : index
      %c0_29 = arith.constant 0 : index
      %57 = vector.load %arg9[%c0_28, %c0_29] : memref<8x1xf32, #tpu.memory_space<vmem>>, vector<8x1xf32>
      %58 = tpu.reciprocal %57 {approx = true} : vector<8x1xf32> -> vector<8x1xf32>
      %c0_30 = arith.constant 0 : index
      %c0_31 = arith.constant 0 : index
      %59 = vector.load %arg10[%c0_30, %c0_31] : memref<8x128xf32, #tpu.memory_space<vmem>>, vector<8x128xf32>
      %60 = vector.broadcast %58 : vector<8x1xf32> to vector<8x128xf32>
      %61 = arith.mulf %59, %60 : vector<8x128xf32>
      %c0_32 = arith.constant 0 : index
      %c0_33 = arith.constant 0 : index
      %62 = vector.load %arg7[%c0_32, %c0_33] : memref<8x128xf32, #tpu.memory_space<vmem>>, vector<8x128xf32>
      tpu.vector_store %arg7[%c0_32, %c0_33], %61 {strides = array<i32>} : memref<8x128xf32, #tpu.memory_space<vmem>>, vector<8x128xf32>,
    } else {
    }
    return
  }
  func.func @transform_0(%arg0: i32, %arg1: i32) -> (i32, i32, i32) {
    %c0_i32 = arith.constant 0 : i32
    %c0_i32_0 = arith.constant 0 : i32
    return %arg0, %arg1, %c0_i32 : i32, i32, i32
  }
  func.func @transform_1(%arg0: i32, %arg1: i32) -> (i32, i32) {
    %c0_i32 = arith.constant 0 : i32
    %c0_i32_0 = arith.constant 0 : i32
    %c0_i32_1 = arith.constant 0 : i32
    return %c0_i32, %c0_i32_0 : i32, i32
  }
  func.func @transform_2(%arg0: i32, %arg1: i32) -> (i32, i32) {
    %c0_i32 = arith.constant 0 : i32
    %c0_i32_0 = arith.constant 0 : i32
    %c0_i32_1 = arith.constant 0 : i32
    return %c0_i32, %c0_i32_0 : i32, i32
  }
  func.func @transform_3(%arg0: i32, %arg1: i32) -> (i32, i32) {
    %c0_i32 = arith.constant 0 : i32
    %c0_i32_0 = arith.constant 0 : i32
    %c0_i32_1 = arith.constant 0 : i32
    return %c0_i32, %c0_i32_0 : i32, i32
  }
  func.func @transform_4(%arg0: i32, %arg1: i32) -> i32 {
    %c0_i32 = arith.constant 0 : i32
    %c0_i32_0 = arith.constant 0 : i32
    return %c0_i32 : i32
  }
  func.func @transform_5(%arg0: i32, %arg1: i32) -> (i32, i32) {
    %c0_i32 = arith.constant 0 : i32
    %c0_i32_0 = arith.constant 0 : i32
    return %arg0, %c0_i32 : i32, i32
  }
}

module attributes {stable_mosaic.version = 11 : i64} {
  func.func @projection_kernel(%arg0: i32, %arg1: memref<16x128xf32, #tpu.memory_space<vmem>>, %arg2: memref<128x128xbf16, #tpu.memory_space<vmem>>, %arg3: memref<1x128xf32, #tpu.memory_space<vmem>>, %arg4: memref<1x128xf32, #tpu.memory_space<vmem>>, %arg5: memref<1x128xf32, #tpu.memory_space<vmem>>, %arg6: memref<128x128xbf16, #tpu.memory_space<vmem>>, %arg7: memref<1x128xf32, #tpu.memory_space<vmem>>, %arg8: memref<1xf32, #tpu.memory_space<smem>>, %arg9: memref<16x128xf32, #tpu.memory_space<vmem>>) attributes {dimension_semantics = [#tpu.dimension_semantics<arbitrary>], iteration_bounds = array<i64: 1>, scalar_prefetch = 0 : i64, scratch_operands = 0 : i64, tpu.core_type = #tpu.core_type<tc>, window_params = [{pipeline_mode = #tpu.pipeline_mode<synchronous>, transform_indices = @transform_0, window_bounds = array<i64: 16, 128>}, {pipeline_mode = #tpu.pipeline_mode<synchronous>, transform_indices = @transform_1, window_bounds = array<i64: 128, 128>}, {pipeline_mode = #tpu.pipeline_mode<synchronous>, transform_indices = @transform_2, window_bounds = array<i64: 1, 128>}, {pipeline_mode = #tpu.pipeline_mode<synchronous>, transform_indices = @transform_3, window_bounds = array<i64: 1, 128>}, {pipeline_mode = #tpu.pipeline_mode<synchronous>, transform_indices = @transform_4, window_bounds = array<i64: 1, 128>}, {pipeline_mode = #tpu.pipeline_mode<synchronous>, transform_indices = @transform_5, window_bounds = array<i64: 128, 128>}, {pipeline_mode = #tpu.pipeline_mode<synchronous>, transform_indices = @transform_6, window_bounds = array<i64: 1, 128>}, {transform_indices = @transform_7, window_bounds = array<i64: 1>}, {pipeline_mode = #tpu.pipeline_mode<synchronous>, transform_indices = @transform_8, window_bounds = array<i64: 16, 128>}]} {
    %c0 = arith.constant 0 : index
    %c0_0 = arith.constant 0 : index
    %0 = vector.load %arg1[%c0, %c0_0] : memref<16x128xf32, #tpu.memory_space<vmem>>, vector<16x128xf32>
    %1 = arith.truncf %0 : vector<16x128xf32> to vector<16x128xbf16>
    %c0_1 = arith.constant 0 : index
    %c0_2 = arith.constant 0 : index
    %2 = vector.load %arg2[%c0_1, %c0_2] : memref<128x128xbf16, #tpu.memory_space<vmem>>, vector<128x128xbf16>
    %cst = arith.constant dense<0.000000e+00> : vector<16x128xf32>
    %3 = tpu.matmul %1, %2, %cst {dimension_numbers = #tpu.dot_dimension_numbers<[1], [0], [0], [1], [0, 0, 1, 1], [], []>} : vector<16x128xbf16>, vector<128x128xbf16>, vector<16x128xf32> -> vector<16x128xf32>
    %c0_3 = arith.constant 0 : index
    %c0_4 = arith.constant 0 : index
    %4 = vector.load %arg3[%c0_3, %c0_4] : memref<1x128xf32, #tpu.memory_space<vmem>>, vector<1x128xf32>
    %5 = vector.broadcast %4 : vector<1x128xf32> to vector<16x128xf32>
    %6 = arith.addf %3, %5 : vector<16x128xf32>
    %cst_5 = arith.constant dense<0.000000e+00> : vector<128xf32>
    %7 = vector.multi_reduction <add>, %6, %cst_5 [0] : vector<16x128xf32> to vector<128xf32>
    %8 = vector.shape_cast %7 : vector<128xf32> to vector<1x128xf32>
    %cst_6 = arith.constant 1.600000e+01 : f32
    %9 = vector.broadcast %cst_6 : f32 to vector<1x128xf32>
    %10 = arith.divf %8, %9 : vector<1x128xf32>
    %11 = arith.mulf %6, %6 : vector<16x128xf32>
    %cst_7 = arith.constant dense<0.000000e+00> : vector<128xf32>
    %12 = vector.multi_reduction <add>, %11, %cst_7 [0] : vector<16x128xf32> to vector<128xf32>
    %13 = vector.shape_cast %12 : vector<128xf32> to vector<1x128xf32>
    %cst_8 = arith.constant 1.600000e+01 : f32
    %14 = vector.broadcast %cst_8 : f32 to vector<1x128xf32>
    %15 = arith.divf %13, %14 : vector<1x128xf32>
    %16 = arith.mulf %10, %10 : vector<1x128xf32>
    %17 = arith.subf %15, %16 : vector<1x128xf32>
    %cst_9 = arith.constant 0.000000e+00 : f32
    %18 = vector.broadcast %cst_9 : f32 to vector<1x128xf32>
    %19 = arith.maximumf %17, %18 : vector<1x128xf32>
    %20 = vector.broadcast %10 : vector<1x128xf32> to vector<16x128xf32>
    %21 = arith.subf %6, %20 : vector<16x128xf32>
    %cst_10 = arith.constant 9.99999974E-6 : f32
    %22 = vector.broadcast %cst_10 : f32 to vector<1x128xf32>
    %23 = arith.addf %19, %22 : vector<1x128xf32>
    %24 = math.rsqrt %23 : vector<1x128xf32>
    %25 = vector.broadcast %24 : vector<1x128xf32> to vector<16x128xf32>
    %26 = arith.mulf %21, %25 : vector<16x128xf32>
    %c0_11 = arith.constant 0 : index
    %c0_12 = arith.constant 0 : index
    %27 = vector.load %arg4[%c0_11, %c0_12] : memref<1x128xf32, #tpu.memory_space<vmem>>, vector<1x128xf32>
    %28 = vector.broadcast %27 : vector<1x128xf32> to vector<16x128xf32>
    %29 = arith.mulf %26, %28 : vector<16x128xf32>
    %c0_13 = arith.constant 0 : index
    %c0_14 = arith.constant 0 : index
    %30 = vector.load %arg5[%c0_13, %c0_14] : memref<1x128xf32, #tpu.memory_space<vmem>>, vector<1x128xf32>
    %31 = vector.broadcast %30 : vector<1x128xf32> to vector<16x128xf32>
    %32 = arith.addf %29, %31 : vector<16x128xf32>
    %c0_15 = arith.constant 0 : index
    %33 = memref.load %arg8[%c0_15] : memref<1xf32, #tpu.memory_space<smem>>
    %cst_16 = arith.constant 0.000000e+00 : f32
    %34 = vector.broadcast %cst_16 : f32 to vector<16x128xf32>
    %35 = arith.cmpf ogt, %32, %34 : vector<16x128xf32>
    %36 = vector.broadcast %33 : f32 to vector<16x128xf32>
    %37 = arith.mulf %36, %32 : vector<16x128xf32>
    %38 = arith.select %35, %32, %37 : vector<16x128xi1>, vector<16x128xf32>
    %39 = arith.truncf %38 : vector<16x128xf32> to vector<16x128xbf16>
    %c0_17 = arith.constant 0 : index
    %c0_18 = arith.constant 0 : index
    %40 = vector.load %arg6[%c0_17, %c0_18] : memref<128x128xbf16, #tpu.memory_space<vmem>>, vector<128x128xbf16>
    %cst_19 = arith.constant dense<0.000000e+00> : vector<16x128xf32>
    %41 = tpu.matmul %39, %40, %cst_19 {dimension_numbers = #tpu.dot_dimension_numbers<[1], [0], [0], [1], [0, 0, 1, 1], [], []>} : vector<16x128xbf16>, vector<128x128xbf16>, vector<16x128xf32> -> vector<16x128xf32>
    %c0_20 = arith.constant 0 : index
    %c0_21 = arith.constant 0 : index
    %42 = vector.load %arg7[%c0_20, %c0_21] : memref<1x128xf32, #tpu.memory_space<vmem>>, vector<1x128xf32>
    %43 = vector.broadcast %42 : vector<1x128xf32> to vector<16x128xf32>
    %44 = arith.addf %41, %43 : vector<16x128xf32>
    %c0_22 = arith.constant 0 : index
    %c0_23 = arith.constant 0 : index
    %45 = vector.load %arg9[%c0_22, %c0_23] : memref<16x128xf32, #tpu.memory_space<vmem>>, vector<16x128xf32>
    tpu.vector_store %arg9[%c0_22, %c0_23], %44 {strides = array<i32>} : memref<16x128xf32, #tpu.memory_space<vmem>>, vector<16x128xf32>,
    return
  }
  func.func @transform_0(%arg0: i32) -> (i32, i32) {
    %c0_i32 = arith.constant 0 : i32
    %c0_i32_0 = arith.constant 0 : i32
    %c0_i32_1 = arith.constant 0 : i32
    return %c0_i32, %c0_i32_0 : i32, i32
  }
  func.func @transform_1(%arg0: i32) -> (i32, i32) {
    %c0_i32 = arith.constant 0 : i32
    %c0_i32_0 = arith.constant 0 : i32
    %c0_i32_1 = arith.constant 0 : i32
    return %c0_i32, %c0_i32_0 : i32, i32
  }
  func.func @transform_2(%arg0: i32) -> (i32, i32) {
    %c0_i32 = arith.constant 0 : i32
    %c0_i32_0 = arith.constant 0 : i32
    %c0_i32_1 = arith.constant 0 : i32
    return %c0_i32, %c0_i32_0 : i32, i32
  }
  func.func @transform_3(%arg0: i32) -> (i32, i32) {
    %c0_i32 = arith.constant 0 : i32
    %c0_i32_0 = arith.constant 0 : i32
    %c0_i32_1 = arith.constant 0 : i32
    return %c0_i32, %c0_i32_0 : i32, i32
  }
  func.func @transform_4(%arg0: i32) -> (i32, i32) {
    %c0_i32 = arith.constant 0 : i32
    %c0_i32_0 = arith.constant 0 : i32
    %c0_i32_1 = arith.constant 0 : i32
    return %c0_i32, %c0_i32_0 : i32, i32
  }
  func.func @transform_5(%arg0: i32) -> (i32, i32) {
    %c0_i32 = arith.constant 0 : i32
    %c0_i32_0 = arith.constant 0 : i32
    %c0_i32_1 = arith.constant 0 : i32
    return %c0_i32, %c0_i32_0 : i32, i32
  }
  func.func @transform_6(%arg0: i32) -> (i32, i32) {
    %c0_i32 = arith.constant 0 : i32
    %c0_i32_0 = arith.constant 0 : i32
    %c0_i32_1 = arith.constant 0 : i32
    return %c0_i32, %c0_i32_0 : i32, i32
  }
  func.func @transform_7(%arg0: i32) -> i32 {
    %c0_i32 = arith.constant 0 : i32
    %c0_i32_0 = arith.constant 0 : i32
    return %c0_i32 : i32
  }
  func.func @transform_8(%arg0: i32) -> (i32, i32) {
    %c0_i32 = arith.constant 0 : i32
    %c0_i32_0 = arith.constant 0 : i32
    %c0_i32_1 = arith.constant 0 : i32
    return %c0_i32, %c0_i32_0 : i32, i32
  }
}

</mosaic_0001>

<llo_original>
// kernel: speaker_encoder_forward.3
$region0: #{speaker_encoder_forward.3}
  #allocation0 [shape = 'u32[]', space=smem, size = 0x4, offset = 0x4, fixed_abs, tag = 'smem constant byte address 0x4 - core index']
  #allocation1 [shape = 'u32[144,128]{1,0:T(1,128)}', space=vmem, size = 0x12000, scoped, tag = 'internal scratch']
  #allocation2 [shape = 'f32[1]{0:T(128)S(6)}', space=smem, size = 0x200, scoped, tag = 'scoped memory for speaker_encoder_forward.3']
  %s0 = inlined_call_operand.vmem [shape: f32[16,128], index: 0, kind: input, shape index: {}]
  %s1 = inlined_call_operand.vmem [shape: bf16[128,128], index: 1, kind: input, shape index: {}]
  %s2 = inlined_call_operand.vmem [shape: f32[1,128], index: 2, kind: input, shape index: {}]
  %s3 = inlined_call_operand.vmem [shape: f32[1,128], index: 3, kind: input, shape index: {}]
  %s4 = inlined_call_operand.vmem [shape: f32[1,128], index: 4, kind: input, shape index: {}]
  %s5 = inlined_call_operand.vmem [shape: bf16[128,128], index: 5, kind: input, shape index: {}]
  %s6 = inlined_call_operand.vmem [shape: f32[1,128], index: 6, kind: input, shape index: {}]
  %s7 = inlined_call_operand.<no memory space> [shape: f32[1], index: 7, kind: input, shape index: {}]
  %s8 = inlined_call_operand.hbm [shape: f32[16,128], index: 8, kind: output, shape index: {}]
  %s9 = sld [smem:[#allocation0]]
  $region42: #{speaker_encoder_forward.3} parent=0
    _
  %s11 = ssub.s32 1, %s9
  %s12 = scalar_select 0, %s11, %s9
  %13 = sst [smem:[#allocation2]] %s7
  $region1: #{speaker_encoder_forward.3} parent=0
    #allocation3 [shape = 'u8[8192]{0}', space=vmem, size = 0x2000, scoped, tag = 'output window, operand 0, single buffered']
    #allocation4 [shape = 's32[1]{0}', space=sflag, size = 0x4, scoped, tag = 'scoped memory for speaker_encoder_forward.3']
    %14 = vsyncpa [#allocation4], 0
    // Predicated region
    $region2: #{speaker_encoder_forward.3} parent=1 // pred_check
      _
    $region3: #{speaker_encoder_forward.3} parent=1 // pred_check_branch
      %16 = sbr.rel (0) target = $region5
    $region4: #{speaker_encoder_forward.3} parent=1 // pred_region
      _
    $region5: #{speaker_encoder_forward.3} parent=1 // pred_fallthru
      _
    // Predicated region
    $region6: #{speaker_encoder_forward.3} parent=1 // pred_check
      _
    $region7: #{speaker_encoder_forward.3} parent=1 // pred_check_branch
      %18 = sbr.rel (0) target = $region9
    $region8: #{speaker_encoder_forward.3} parent=1 // pred_region
      _
    $region9: #{speaker_encoder_forward.3} parent=1 // pred_fallthru
      _
    // Predicated region
    $region10: #{speaker_encoder_forward.3} parent=1 // pred_check
      _
    $region11: #{speaker_encoder_forward.3} parent=1 // pred_check_branch
      %20 = sbr.rel (0) target = $region13
    $region12: #{speaker_encoder_forward.3} parent=1 // pred_region
      _
    $region13: #{speaker_encoder_forward.3} parent=1 // pred_fallthru
      _
    // Predicated region
    $region14: #{speaker_encoder_forward.3} parent=1 // pred_check
      _
    $region15: #{speaker_encoder_forward.3} parent=1 // pred_check_branch
      %22 = sbr.rel (0) target = $region17
    $region16: #{speaker_encoder_forward.3} parent=1 // pred_region
      _
    $region17: #{speaker_encoder_forward.3} parent=1 // pred_fallthru
      _
    // Predicated region
    $region18: #{speaker_encoder_forward.3} parent=1 // pred_check
      _
    $region19: #{speaker_encoder_forward.3} parent=1 // pred_check_branch
      %24 = sbr.rel (0) target = $region21
    $region20: #{speaker_encoder_forward.3} parent=1 // pred_region
      _
    $region21: #{speaker_encoder_forward.3} parent=1 // pred_fallthru
      _
    // Predicated region
    $region22: #{speaker_encoder_forward.3} parent=1 // pred_check
      _
    $region23: #{speaker_encoder_forward.3} parent=1 // pred_check_branch
      %26 = sbr.rel (0) target = $region25
    $region24: #{speaker_encoder_forward.3} parent=1 // pred_region
      _
    $region25: #{speaker_encoder_forward.3} parent=1 // pred_fallthru
      _
    // Predicated region
    $region26: #{speaker_encoder_forward.3} parent=1 // pred_check
      _
    $region27: #{speaker_encoder_forward.3} parent=1 // pred_check_branch
      %28 = sbr.rel (0) target = $region29
    $region28: #{speaker_encoder_forward.3} parent=1 // pred_region
      _
    $region29: #{speaker_encoder_forward.3} parent=1 // pred_fallthru
      _
    // Predicated region
    $region30: #{speaker_encoder_forward.3} parent=1 // pred_check
      _
    $region31: #{speaker_encoder_forward.3} parent=1 // pred_check_branch
      %30 = sbr.rel (0) target = $region33
    $region32: #{speaker_encoder_forward.3} parent=1 // pred_region
      _
    $region33: #{speaker_encoder_forward.3} parent=1 // pred_fallthru
      _
    %v32 = vld [vmem:[%s0] sm:$0xff]
    %v33 = vld [vmem:[%s0 + $0x8] sm:$0xff]
    %v34 = vpack.c.bf16 %v33, %v32
    %v35 = vld [vmem:[%s1] sm:$0xf]
    %v36 = vld [vmem:[%s1 + $0x4] sm:$0xf]
    %v37 = vld [vmem:[%s1 + $0x8] sm:$0xf]
    %v38 = vld [vmem:[%s1 + $0xc] sm:$0xf]
    %v39 = vld [vmem:[%s1 + $0x10] sm:$0xf]
    %v40 = vld [vmem:[%s1 + $0x14] sm:$0xf]
    %v41 = vld [vmem:[%s1 + $0x18] sm:$0xf]
    %v42 = vld [vmem:[%s1 + $0x1c] sm:$0xf]
    %v43 = vld [vmem:[%s1 + $0x20] sm:$0xf]
    %v44 = vld [vmem:[%s1 + $0x24] sm:$0xf]
    %v45 = vld [vmem:[%s1 + $0x28] sm:$0xf]
    %v46 = vld [vmem:[%s1 + $0x2c] sm:$0xf]
    %v47 = vld [vmem:[%s1 + $0x30] sm:$0xf]
    %v48 = vld [vmem:[%s1 + $0x34] sm:$0xf]
    %v49 = vld [vmem:[%s1 + $0x38] sm:$0xf]
    %v50 = vld [vmem:[%s1 + $0x3c] sm:$0xf]
    %v51 = vld [vmem:[%s2] sm:$0x1]
    %v53 = vlaneseq
    %v54 = vshrl.u32 %v53, 7
    %v55 = vsub.s32 0, %v54
    %v56 = vrot.slane %v51, %v55
    %v74 = vunpack.c.l.b16 %v35
    %v75 = vunpack.c.l.b16 %v36
    %v76 = vunpack.c.l.b16 %v37
    %v77 = vunpack.c.l.b16 %v38
    %v78 = vunpack.c.l.b16 %v39
    %v79 = vunpack.c.l.b16 %v40
    %v80 = vunpack.c.l.b16 %v41
    %v81 = vunpack.c.l.b16 %v42
    %v82 = vunpack.c.l.b16 %v43
    %v83 = vunpack.c.l.b16 %v44
    %v84 = vunpack.c.l.b16 %v45
    %v85 = vunpack.c.l.b16 %v46
    %v86 = vunpack.c.l.b16 %v47
    %v87 = vunpack.c.l.b16 %v48
    %v88 = vunpack.c.l.b16 %v49
    %v89 = vunpack.c.l.b16 %v50
    %v90 = vpack.c.b16 %v75, %v74
    %v91 = vpack.c.b16 %v77, %v76
    %v92 = vpack.c.b16 %v79, %v78
    %v93 = vpack.c.b16 %v81, %v80
    %v94 = vpack.c.b16 %v83, %v82
    %v95 = vpack.c.b16 %v85, %v84
    %v96 = vpack.c.b16 %v87, %v86
    %v97 = vpack.c.b16 %v89, %v88
    %106 = vmatprep.subr.bf16.mxu0 0
    %107 = vmatpush1.bf16.msra.mxu0 %v90
    %108 = vmatprep.subr.bf16.mxu0 0
    %109 = vmatpush1.bf16.msra.mxu0 %v91
    %110 = vmatprep.subr.bf16.mxu0 0
    %111 = vmatpush1.bf16.msra.mxu0 %v92
    %112 = vmatprep.subr.bf16.mxu0 0
    %113 = vmatpush1.bf16.msra.mxu0 %v93
    %114 = vmatprep.subr.bf16.mxu0 0
    %115 = vmatpush1.bf16.msra.mxu0 %v94
    %116 = vmatprep.subr.bf16.mxu0 0
    %117 = vmatpush1.bf16.msra.mxu0 %v95
    %118 = vmatprep.subr.bf16.mxu0 0
    %119 = vmatpush1.bf16.msra.mxu0 %v96
    %120 = vmatprep.subr.bf16.mxu0 0
    %121 = vmatpush1.bf16.msra.mxu0 %v97
    %122 = vmatprep.subr.bf16.mxu0 0
    %123 = vmatpush1.bf16.msra.mxu0 0
    %124 = vmatprep.subr.bf16.mxu0 0
    %125 = vmatpush1.bf16.msra.mxu0 0
    %126 = vmatprep.subr.bf16.mxu0 0
    %127 = vmatpush1.bf16.msra.mxu0 0
    %128 = vmatprep.subr.bf16.mxu0 0
    %129 = vmatpush1.bf16.msra.mxu0 0
    %130 = vmatprep.subr.bf16.mxu0 0
    %131 = vmatpush1.bf16.msra.mxu0 0
    %132 = vmatprep.subr.bf16.mxu0 0
    %133 = vmatpush1.bf16.msra.mxu0 0
    %134 = vmatprep.subr.bf16.mxu0 0
    %135 = vmatpush1.bf16.msra.mxu0 0
    %136 = vmatprep.subr.bf16.mxu0 0
    %137 = vmatpush1.bf16.msra.mxu0 0
    %138 = vmatprep.mubr.bf16.mxu0 0
    %139 = vmatmul.mubr.bf16.gmra.mrb[0].mxu0 %v34
    %v140 = vpop.f32.mrb[0].mxu0
    %v141 = vadd.f32 %v56, %v140
    %v142 = vpop.f32.mrb[0].mxu0
    %v143 = vpop.f32.mrb[0].mxu0
    %v144 = vadd.f32 %v56, %v143
    %v145 = vpop.f32.mrb[0].mxu0
    %146 = vdwg.mxu0
    %v147 = vadd.f32 %v141, %v144
    %v148 = vrot.slane %v147, 4
    %v149 = vadd.f32 %v147, %v148
    %v150 = vrot.slane %v149, 2
    %v151 = vadd.f32 %v149, %v150
    %v152 = vrot.slane %v151, 1
    %v153 = vadd.f32 %v151, %v152
    %v154 = vrcp.pop 16.0
    %v155 = vmul.f32 %v153, %v154
    %v156 = vmul.f32 %v141, %v141
    %v157 = vmul.f32 %v144, %v144
    %v158 = vadd.f32 %v156, %v157
    %v159 = vrot.slane %v158, 4
    %v160 = vadd.f32 %v158, %v159
    %v161 = vrot.slane %v160, 2
    %v162 = vadd.f32 %v160, %v161
    %v163 = vrot.slane %v162, 1
    %v164 = vadd.f32 %v162, %v163
    %v165 = vmul.f32 %v164, %v154
    %v166 = vmul.f32 %v155, %v155
    %v167 = vsub.f32 %v165, %v166
    %v168 = vmax.f32 %v167, 0.0
    %v169 = vsub.f32 %v141, %v155
    %v170 = vsub.f32 %v144, %v155
    %v171 = vadd.f32 %v168, 1e-05
    %v172 = vrsqrt.pop %v171
    %v173 = vmul.f32 %v169, %v172
    %v174 = vmul.f32 %v170, %v172
    %v175 = vld [vmem:[%s3] sm:$0x1]
    %v177 = vlaneseq
    %v178 = vshrl.u32 %v177, 7
    %v179 = vsub.s32 0, %v178
    %v180 = vrot.slane %v175, %v179
    %v182 = vmul.f32 %v173, %v180
    %v183 = vmul.f32 %v174, %v180
    %v184 = vld [vmem:[%s4] sm:$0x1]
    %v186 = vlaneseq
    %v187 = vshrl.u32 %v186, 7
    %v188 = vsub.s32 0, %v187
    %v189 = vrot.slane %v184, %v188
    %v191 = vadd.f32 %v182, %v189
    %v192 = vadd.f32 %v183, %v189
    %s193 = sld [smem:[#allocation2]]
    %vm194 = vcmp.gt.f32.partialorder %v191, 0.0
    %vm195 = vcmp.gt.f32.partialorder %v192, 0.0
    %v196 = vstv %s193
    %v197 = vmul.f32 %v196, %v191
    %v198 = vmul.f32 %v196, %v192
    %v199 = vsel %vm194, %v191, %v197
    %v200 = vsel %vm195, %v192, %v198
    %v201 = vpack.c.bf16 %v200, %v199
    %v202 = vld [vmem:[%s5] sm:$0xf]
    %v203 = vld [vmem:[%s5 + $0x4] sm:$0xf]
    %v204 = vld [vmem:[%s5 + $0x8] sm:$0xf]
    %v205 = vld [vmem:[%s5 + $0xc] sm:$0xf]
    %v206 = vld [vmem:[%s5 + $0x10] sm:$0xf]
    %v207 = vld [vmem:[%s5 + $0x14] sm:$0xf]
    %v208 = vld [vmem:[%s5 + $0x18] sm:$0xf]
    %v209 = vld [vmem:[%s5 + $0x1c] sm:$0xf]
    %v210 = vld [vmem:[%s5 + $0x20] sm:$0xf]
    %v211 = vld [vmem:[%s5 + $0x24] sm:$0xf]
    %v212 = vld [vmem:[%s5 + $0x28] sm:$0xf]
    %v213 = vld [vmem:[%s5 + $0x2c] sm:$0xf]
    %v214 = vld [vmem:[%s5 + $0x30] sm:$0xf]
    %v215 = vld [vmem:[%s5 + $0x34] sm:$0xf]
    %v216 = vld [vmem:[%s5 + $0x38] sm:$0xf]
    %v217 = vld [vmem:[%s5 + $0x3c] sm:$0xf]
    %v218 = vld [vmem:[%s6] sm:$0x1]
    %v220 = vlaneseq
    %v221 = vshrl.u32 %v220, 7
    %v222 = vsub.s32 0, %v221
    %v223 = vrot.slane %v218, %v222
    %v241 = vunpack.c.l.b16 %v202
    %v242 = vunpack.c.l.b16 %v203
    %v243 = vunpack.c.l.b16 %v204
    %v244 = vunpack.c.l.b16 %v205
    %v245 = vunpack.c.l.b16 %v206
    %v246 = vunpack.c.l.b16 %v207
    %v247 = vunpack.c.l.b16 %v208
    %v248 = vunpack.c.l.b16 %v209
    %v249 = vunpack.c.l.b16 %v210
    %v250 = vunpack.c.l.b16 %v211
    %v251 = vunpack.c.l.b16 %v212
    %v252 = vunpack.c.l.b16 %v213
    %v253 = vunpack.c.l.b16 %v214
    %v254 = vunpack.c.l.b16 %v215
    %v255 = vunpack.c.l.b16 %v216
    %v256 = vunpack.c.l.b16 %v217
    %v257 = vpack.c.b16 %v242, %v241
    %v258 = vpack.c.b16 %v244, %v243
    %v259 = vpack.c.b16 %v246, %v245
    %v260 = vpack.c.b16 %v248, %v247
    %v261 = vpack.c.b16 %v250, %v249
    %v262 = vpack.c.b16 %v252, %v251
    %v263 = vpack.c.b16 %v254, %v253
    %v264 = vpack.c.b16 %v256, %v255
    %273 = vmatprep.subr.bf16.mxu0 0
    %274 = vmatpush1.bf16.msra.mxu0 %v257
    %275 = vmatprep.subr.bf16.mxu0 0
    %276 = vmatpush1.bf16.msra.mxu0 %v258
    %277 = vmatprep.subr.bf16.mxu0 0
    %278 = vmatpush1.bf16.msra.mxu0 %v259
    %279 = vmatprep.subr.bf16.mxu0 0
    %280 = vmatpush1.bf16.msra.mxu0 %v260
    %281 = vmatprep.subr.bf16.mxu0 0
    %282 = vmatpush1.bf16.msra.mxu0 %v261
    %283 = vmatprep.subr.bf16.mxu0 0
    %284 = vmatpush1.bf16.msra.mxu0 %v262
    %285 = vmatprep.subr.bf16.mxu0 0
    %286 = vmatpush1.bf16.msra.mxu0 %v263
    %287 = vmatprep.subr.bf16.mxu0 0
    %288 = vmatpush1.bf16.msra.mxu0 %v264
    %289 = vmatprep.subr.bf16.mxu0 0
    %290 = vmatpush1.bf16.msra.mxu0 0
    %291 = vmatprep.subr.bf16.mxu0 0
    %292 = vmatpush1.bf16.msra.mxu0 0
    %293 = vmatprep.subr.bf16.mxu0 0
    %294 = vmatpush1.bf16.msra.mxu0 0
    %295 = vmatprep.subr.bf16.mxu0 0
    %296 = vmatpush1.bf16.msra.mxu0 0
    %297 = vmatprep.subr.bf16.mxu0 0
    %298 = vmatpush1.bf16.msra.mxu0 0
    %299 = vmatprep.subr.bf16.mxu0 0
    %300 = vmatpush1.bf16.msra.mxu0 0
    %301 = vmatprep.subr.bf16.mxu0 0
    %302 = vmatpush1.bf16.msra.mxu0 0
    %303 = vmatprep.subr.bf16.mxu0 0
    %304 = vmatpush1.bf16.msra.mxu0 0
    %305 = vmatprep.mubr.bf16.mxu0 0
    %306 = vmatmul.mubr.bf16.gmra.mrb[0].mxu0 %v201
    %v307 = vpop.f32.mrb[0].mxu0
    %v308 = vadd.f32 %v223, %v307
    %v309 = vpop.f32.mrb[0].mxu0
    %v310 = vpop.f32.mrb[0].mxu0
    %v311 = vadd.f32 %v223, %v310
    %v312 = vpop.f32.mrb[0].mxu0
    %313 = vdwg.mxu0
    %314 = vst [vmem:[#allocation3] sm:$0xff] %v308
    %315 = vst [vmem:[#allocation3 + $0x8] sm:$0xff] %v311
    // Predicated region
    $region34: #{speaker_encoder_forward.3} parent=1 // pred_check
      _
    $region35: #{speaker_encoder_forward.3} parent=1 // pred_check_branch
      %317 = sbr.rel (0) target = $region37
    $region36: #{speaker_encoder_forward.3} parent=1 // pred_region
      %s319 = ssub.s32 256, 256
      %320 = vsyncadd [#allocation4], %s319
      %s321 = sshll.u32 [#allocation3], 4
      %s322 = int_to_ptr.vmem [resolvable:$true] %s321
      %327 = dma.vmem_to_hbm [thread:$0]  %s322, 256, %s8, [#allocation4], 128, 128, 8
    $region37: #{speaker_encoder_forward.3} parent=1 // pred_fallthru
      _
    // Predicated region
    $region38: #{speaker_encoder_forward.3} parent=1 // pred_check
      _
    $region39: #{speaker_encoder_forward.3} parent=1 // pred_check_branch
      %329 = sbr.rel (0) target = $region41
    $region40: #{speaker_encoder_forward.3} parent=1 // pred_region
      %330 = dma.done [#allocation4], 256
    $region41: #{speaker_encoder_forward.3} parent=1 // pred_fallthru
      _
    %331 = vsyncpa [#allocation4], 1

// kernel: speaker_encoder_forward.2
$region0: #{speaker_encoder_forward.2}
  #allocation0 [shape = 'u32[]', space=smem, size = 0x4, offset = 0x4, fixed_abs, tag = 'smem constant byte address 0x4 - core index']
  #allocation1 [shape = 'u32[144,128]{1,0:T(1,128)}', space=vmem, size = 0x12000, scoped, tag = 'internal scratch']
  #allocation2 [shape = 'f32[8,1]{1,0:T(8,128)}', space=vmem, size = 0x1000, scoped, tag = 'scratch operand']
  #allocation3 [shape = 'f32[8,1]{1,0:T(8,128)}', space=vmem, size = 0x1000, scoped, tag = 'scratch operand']
  #allocation4 [shape = 'f32[8,128]{1,0:T(8,128)}', space=vmem, size = 0x1000, scoped, tag = 'scratch operand']
  #allocation5 [shape = 'f32[1]{0:T(128)S(6)}', space=smem, size = 0x200, scoped, tag = 'scoped memory for speaker_encoder_forward.2']
  %s0 = inlined_call_operand.vmem [shape: f32[16,32,128], index: 0, kind: input, shape index: {}]
  %s1 = inlined_call_operand.vmem [shape: bf16[128,128], index: 1, kind: input, shape index: {}]
  %s2 = inlined_call_operand.vmem [shape: f32[1,128], index: 2, kind: input, shape index: {}]
  %s3 = inlined_call_operand.vmem [shape: f32[1,128], index: 3, kind: input, shape index: {}]
  %s4 = inlined_call_operand.<no memory space> [shape: f32[1], index: 4, kind: input, shape index: {}]
  %s5 = inlined_call_operand.vmem [shape: f32[16,128], index: 5, kind: output, shape index: {}]
  %s6 = sld [smem:[#allocation0]]
  $region99: #{speaker_encoder_forward.2} parent=0
    _
  %s8 = ssub.s32 1, %s6
  %s9 = scalar_select 0, %s8, %s6
  %10 = sst [smem:[#allocation5]] %s4
  $region1: #{speaker_encoder_forward.2} parent=0
    #allocation6 [shape = 'u8[131072]{0}', space=vmem, size = 0x20000, scoped, tag = 'input window, operand 0']
    loop: start=0, step=1, limit=6
    $region2: #{speaker_encoder_forward.2} parent=1 // loop_pre_header
      _
    $region3: #{speaker_encoder_forward.2} parent=1 // loop_header
      %s12 = sphi 0, %s16
      %p13 = scmp.ge.s32.totalorder %s12, 6
      %s19 = sphi 0, %s31
      %s20 = sphi 0, %s27
      %s21 = sphi 0, %s19
      %s22 = sphi 0, %s20
      %s23 = sphi 0, %s21
      %s24 = sphi 0, %s22
      %s36 = sphi 0, %s38
      %s39 = sphi 0, %s36
      %s40 = sphi 0, %s39
      %s56 = sphi 0, %s40
      %s60 = sphi 0, %s60
      %s62 = sphi 0, %s60
      %s63 = sphi 0, %s62
      %s77 = sphi 0, %s63
      %s81 = sphi 0, %s81
      %s83 = sphi 0, %s81
      %s84 = sphi 0, %s83
      %s98 = sphi 0, %s84
      %s102 = sphi 0, %s102
      %s104 = sphi 0, %s102
      %s105 = sphi 0, %s104
      %s119 = sphi 0, %s105
      %s123 = sphi 0, %s123
      %s125 = sphi 0, %s123
      %s126 = sphi 0, %s125
      %s140 = sphi 0, %s126
      %s146 = sphi 0, %s148
      %s149 = sphi 0, %s146
      %s150 = sphi 0, %s149
      %s166 = sphi 0, %s150
    $region4: #{speaker_encoder_forward.2} parent=1 // loop_header_branch
      %15 = sbr.rel (%p13) target = $region8
    $region5: #{speaker_encoder_forward.2} parent=1 // loop_body
      %s17 = ssub.s32 %s12, 1
      %s18 = ssub.s32 %s12, 2
      %s25 = sadd.s32 1, %s20
      %p26 = scmp.ge.s32.totalorder %s25, 2
      %s27 = scalar_select %p26, 0, %s25
      %s28 = sadd.s32 1, %s19
      %s29 = scalar_select %p26, %s28, %s19
      %p30 = scmp.ge.s32.totalorder %s29, 2
      %s31 = scalar_select %p30, 0, %s29
      %s32 = ssub.s32 %s19, %s31
      %s33 = ssub.s32 %s20, %s27
      %s34 = sor.u32 %s32, %s33
      %p35 = scmp.eq.s32.totalorder %s34, 0
      %s37 = sadd.s32 %s36, 1
      %s38 = scalar_select %p35, %s36, %s37
      %p41 = pneg %p35
      %p42 = scmp.eq.s32.totalorder %s12, 3
      %p43 = por %p41, %p42
      %p44 = scmp.ne.s32.totalorder %s36, %s39
      %p45 = scmp.eq.s32.totalorder %s12, 0
      %p46 = por %p44, %p45
      %p47 = scmp.ne.s32.totalorder %s36, %s39
      %p48 = scmp.eq.s32.totalorder %s17, 3
      %p49 = por %p47, %p48
      %p50 = scmp.ne.s32.totalorder %s39, %s40
      %p51 = scmp.eq.s32.totalorder %s17, 0
      %p52 = por %p50, %p51
      %p53 = scmp.ne.s32.totalorder %s39, %s40
      %p54 = scmp.eq.s32.totalorder %s18, 3
      %p55 = por %p53, %p54
      %p57 = scmp.ne.s32.totalorder %s40, %s56
      %p58 = scmp.eq.s32.totalorder %s18, 0
      %p59 = por %p57, %p58
      %s61 = sadd.s32 %s60, 1
      %p64 = scmp.eq.s32.totalorder %s12, 3
      %p65 = scmp.ne.s32.totalorder %s60, %s62
      %p66 = scmp.eq.s32.totalorder %s12, 0
      %p67 = por %p65, %p66
      %p68 = scmp.ne.s32.totalorder %s60, %s62
      %p69 = scmp.eq.s32.totalorder %s17, 3
      %p70 = por %p68, %p69
      %p71 = scmp.ne.s32.totalorder %s62, %s63
      %p72 = scmp.eq.s32.totalorder %s17, 0
      %p73 = por %p71, %p72
      %p74 = scmp.ne.s32.totalorder %s62, %s63
      %p75 = scmp.eq.s32.totalorder %s18, 3
      %p76 = por %p74, %p75
      %p78 = scmp.ne.s32.totalorder %s63, %s77
      %p79 = scmp.eq.s32.totalorder %s18, 0
      %p80 = por %p78, %p79
      %s82 = sadd.s32 %s81, 1
      %p85 = scmp.eq.s32.totalorder %s12, 3
      %p86 = scmp.ne.s32.totalorder %s81, %s83
      %p87 = scmp.eq.s32.totalorder %s12, 0
      %p88 = por %p86, %p87
      %p89 = scmp.ne.s32.totalorder %s81, %s83
      %p90 = scmp.eq.s32.totalorder %s17, 3
      %p91 = por %p89, %p90
      %p92 = scmp.ne.s32.totalorder %s83, %s84
      %p93 = scmp.eq.s32.totalorder %s17, 0
      %p94 = por %p92, %p93
      %p95 = scmp.ne.s32.totalorder %s83, %s84
      %p96 = scmp.eq.s32.totalorder %s18, 3
      %p97 = por %p95, %p96
      %p99 = scmp.ne.s32.totalorder %s84, %s98
      %p100 = scmp.eq.s32.totalorder %s18, 0
      %p101 = por %p99, %p100
      %s103 = sadd.s32 %s102, 1
      %p106 = scmp.eq.s32.totalorder %s12, 3
      %p107 = scmp.ne.s32.totalorder %s102, %s104
      %p108 = scmp.eq.s32.totalorder %s12, 0
      %p109 = por %p107, %p108
      %p110 = scmp.ne.s32.totalorder %s102, %s104
      %p111 = scmp.eq.s32.totalorder %s17, 3
      %p112 = por %p110, %p111
      %p113 = scmp.ne.s32.totalorder %s104, %s105
      %p114 = scmp.eq.s32.totalorder %s17, 0
      %p115 = por %p113, %p114
      %p116 = scmp.ne.s32.totalorder %s104, %s105
      %p117 = scmp.eq.s32.totalorder %s18, 3
      %p118 = por %p116, %p117
      %p120 = scmp.ne.s32.totalorder %s105, %s119
      %p121 = scmp.eq.s32.totalorder %s18, 0
      %p122 = por %p120, %p121
      %s124 = sadd.s32 %s123, 1
      %p127 = scmp.eq.s32.totalorder %s12, 3
      %p128 = scmp.ne.s32.totalorder %s123, %s125
      %p129 = scmp.eq.s32.totalorder %s12, 0
      %p130 = por %p128, %p129
      %p131 = scmp.ne.s32.totalorder %s123, %s125
      %p132 = scmp.eq.s32.totalorder %s17, 3
      %p133 = por %p131, %p132
      %p134 = scmp.ne.s32.totalorder %s125, %s126
      %p135 = scmp.eq.s32.totalorder %s17, 0
      %p136 = por %p134, %p135
      %p137 = scmp.ne.s32.totalorder %s125, %s126
      %p138 = scmp.eq.s32.totalorder %s18, 3
      %p139 = por %p137, %p138
      %p141 = scmp.ne.s32.totalorder %s126, %s140
      %p142 = scmp.eq.s32.totalorder %s18, 0
      %p143 = por %p141, %p142
      %s144 = ssub.s32 %s19, %s31
      %p145 = scmp.eq.s32.totalorder %s144, 0
      %s147 = sadd.s32 %s146, 1
      %s148 = scalar_select %p145, %s146, %s147
      %p151 = pneg %p145
      %p152 = scmp.eq.s32.totalorder %s12, 3
      %p153 = por %p151, %p152
      %p154 = scmp.ne.s32.totalorder %s146, %s149
      %p155 = scmp.eq.s32.totalorder %s12, 0
      %p156 = por %p154, %p155
      %p157 = scmp.ne.s32.totalorder %s146, %s149
      %p158 = scmp.eq.s32.totalorder %s17, 3
      %p159 = por %p157, %p158
      %p160 = scmp.ne.s32.totalorder %s149, %s150
      %p161 = scmp.eq.s32.totalorder %s17, 0
      %p162 = por %p160, %p161
      %p163 = scmp.ne.s32.totalorder %s149, %s150
      %p164 = scmp.eq.s32.totalorder %s18, 3
      %p165 = por %p163, %p164
      %p167 = scmp.ne.s32.totalorder %s150, %s166
      %p168 = scmp.eq.s32.totalorder %s18, 0
      %p169 = por %p167, %p168
      %p170 = scmp.le.s32.totalorder 1, %s12
      %p171 = scmp.lt.s32.totalorder %s12, 5
      %p172 = pnand %p170, %p171
      %p173 = pneg %p172
      // Predicated region
      $region9: #{speaker_encoder_forward.2} parent=5 // pred_check
        _
      $region10: #{speaker_encoder_forward.2} parent=5 // pred_check_branch
        %175 = sbr.rel (%p172) target = $region12
      $region11: #{speaker_encoder_forward.2} parent=5 // pred_region
        %s176 = ssub.s32 %s12, 1
        // Predicated region
        $region13: #{speaker_encoder_forward.2} parent=11 // pred_check
          %p177 = pneg %p73
        $region14: #{speaker_encoder_forward.2} parent=11 // pred_check_branch
          %179 = sbr.rel (%p177) target = $region16
        $region15: #{speaker_encoder_forward.2} parent=11 // pred_region
          _
        $region16: #{speaker_encoder_forward.2} parent=11 // pred_fallthru
          _
        // Predicated region
        $region17: #{speaker_encoder_forward.2} parent=11 // pred_check
          %p180 = pneg %p94
        $region18: #{speaker_encoder_forward.2} parent=11 // pred_check_branch
          %182 = sbr.rel (%p180) target = $region20
        $region19: #{speaker_encoder_forward.2} parent=11 // pred_region
          _
        $region20: #{speaker_encoder_forward.2} parent=11 // pred_fallthru
          _
        // Predicated region
        $region21: #{speaker_encoder_forward.2} parent=11 // pred_check
          %p183 = pneg %p115
        $region22: #{speaker_encoder_forward.2} parent=11 // pred_check_branch
          %185 = sbr.rel (%p183) target = $region24
        $region23: #{speaker_encoder_forward.2} parent=11 // pred_region
          _
        $region24: #{speaker_encoder_forward.2} parent=11 // pred_fallthru
          _
        // Predicated region
        $region25: #{speaker_encoder_forward.2} parent=11 // pred_check
          %p186 = pneg %p136
        $region26: #{speaker_encoder_forward.2} parent=11 // pred_check_branch
          %188 = sbr.rel (%p186) target = $region28
        $region27: #{speaker_encoder_forward.2} parent=11 // pred_region
          _
        $region28: #{speaker_encoder_forward.2} parent=11 // pred_fallthru
          _
      $region12: #{speaker_encoder_forward.2} parent=5 // pred_fallthru
        _
      %p189 = scmp.lt.s32.totalorder %s12, 4
      // Predicated region
      $region29: #{speaker_encoder_forward.2} parent=5 // pred_check
        %p190 = pneg %p189
      $region30: #{speaker_encoder_forward.2} parent=5 // pred_check_branch
        %192 = sbr.rel (%p190) target = $region32
      $region31: #{speaker_encoder_forward.2} parent=5 // pred_region
        // Predicated region
        $region33: #{speaker_encoder_forward.2} parent=31 // pred_check
          %p193 = pneg %p46
        $region34: #{speaker_encoder_forward.2} parent=31 // pred_check_branch
          %195 = sbr.rel (%p193) target = $region36
        $region35: #{speaker_encoder_forward.2} parent=31 // pred_region
          %s196 = sand.u32 %s36, 1
          %s197 = sand.u32 %s36, 1
          %s198 = smul.addr %s197, 128
          %s199 = scalar_lea.vmem [#allocation6], %s198
          %s200 = smul.u32 8, %s19
          %s201 = smul.u32 2, %s20
          %s202 = smul.addr %s200, 4
          %s203 = sadd.s32 %s201, %s202
          %s204 = smul.addr %s203, 8
          %s205 = scalar_lea.vmem %s0, %s204
          // Predicated region
          $region37: #{speaker_encoder_forward.2} parent=35 // pred_check
            _
          $region38: #{speaker_encoder_forward.2} parent=35 // pred_check_branch
            %207 = sbr.rel (0) target = $region40
          $region39: #{speaker_encoder_forward.2} parent=35 // pred_region
            // Predicated region
            $region41: #{speaker_encoder_forward.2} parent=39 // pred_check
              _
            $region42: #{speaker_encoder_forward.2} parent=39 // pred_check_branch
              %209 = sbr.rel (0) target = $region44
            $region43: #{speaker_encoder_forward.2} parent=39 // pred_region
              // Predicated region
              $region56: #{speaker_encoder_forward.2} parent=43 // pred_check
                _
              $region57: #{speaker_encoder_forward.2} parent=43 // pred_check_branch
                %254 = sbr.rel (0) target = $region59
              $region58: #{speaker_encoder_forward.2} parent=43 // pred_region
                loop: start=0, step=1, limit=1
                $region60: #{speaker_encoder_forward.2} parent=58 // loop_pre_header
                  _
                $region61: #{speaker_encoder_forward.2} parent=58 // loop_header
                  %s256 = sphi 0, %s260
                  %p257 = scmp.ge.s32.totalorder %s256, 1
                  %s261 = sphi %s205, %s205
                  %s262 = sphi %s199, %s199
                $region62: #{speaker_encoder_forward.2} parent=58 // loop_header_branch
                  %259 = sbr.rel (%p257) target = $region66
                $region63: #{speaker_encoder_forward.2} parent=58 // loop_body
                  %v263 = vld [vmem:[%s261] sm:$0xff]
                  %264 = vst [vmem:[%s262] sm:$0xff] %v263
                  %v265 = vld [vmem:[%s261 + $0x8] sm:$0xff]
                  %266 = vst [vmem:[%s262 + $0x8] sm:$0xff] %v265
                  %v267 = vld [vmem:[%s261 + $0x20] sm:$0xff]
                  %268 = vst [vmem:[%s262 + $0x10] sm:$0xff] %v267
                  %v269 = vld [vmem:[%s261 + $0x28] sm:$0xff]
                  %270 = vst [vmem:[%s262 + $0x18] sm:$0xff] %v269
                  %v271 = vld [vmem:[%s261 + $0x40] sm:$0xff]
                  %272 = vst [vmem:[%s262 + $0x20] sm:$0xff] %v271
                  %v273 = vld [vmem:[%s261 + $0x48] sm:$0xff]
                  %274 = vst [vmem:[%s262 + $0x28] sm:$0xff] %v273
                  %v275 = vld [vmem:[%s261 + $0x60] sm:$0xff]
                  %276 = vst [vmem:[%s262 + $0x30] sm:$0xff] %v275
                  %v277 = vld [vmem:[%s261 + $0x68] sm:$0xff]
                  %278 = vst [vmem:[%s262 + $0x38] sm:$0xff] %v277
                  %v279 = vld [vmem:[%s261 + $0x80] sm:$0xff]
                  %280 = vst [vmem:[%s262 + $0x40] sm:$0xff] %v279
                  %v281 = vld [vmem:[%s261 + $0x88] sm:$0xff]
                  %282 = vst [vmem:[%s262 + $0x48] sm:$0xff] %v281
                  %v283 = vld [vmem:[%s261 + $0xa0] sm:$0xff]
                  %284 = vst [vmem:[%s262 + $0x50] sm:$0xff] %v283
                  %v285 = vld [vmem:[%s261 + $0xa8] sm:$0xff]
                  %286 = vst [vmem:[%s262 + $0x58] sm:$0xff] %v285
                  %v287 = vld [vmem:[%s261 + $0xc0] sm:$0xff]
                  %288 = vst [vmem:[%s262 + $0x60] sm:$0xff] %v287
                  %v289 = vld [vmem:[%s261 + $0xc8] sm:$0xff]
                  %290 = vst [vmem:[%s262 + $0x68] sm:$0xff] %v289
                  %v291 = vld [vmem:[%s261 + $0xe0] sm:$0xff]
                  %292 = vst [vmem:[%s262 + $0x70] sm:$0xff] %v291
                  %v293 = vld [vmem:[%s261 + $0xe8] sm:$0xff]
                  %294 = vst [vmem:[%s262 + $0x78] sm:$0xff] %v293
                $region64: #{speaker_encoder_forward.2} parent=58 // loop_footer
                  %s260 = sadd.s32 1, %s256
                $region65: #{speaker_encoder_forward.2} parent=58 // loop_footer_branch
                  %255 = sbr.rel target = $region61
                $region66: #{speaker_encoder_forward.2} parent=58 // loop_exit
                  _
              $region59: #{speaker_encoder_forward.2} parent=43 // pred_fallthru
                _
              // Predicated region
              $region67: #{speaker_encoder_forward.2} parent=43 // pred_check
                _
              $region68: #{speaker_encoder_forward.2} parent=43 // pred_check_branch
                %296 = sbr.rel target = $region70
              $region69: #{speaker_encoder_forward.2} parent=43 // pred_region
                _
              $region70: #{speaker_encoder_forward.2} parent=43 // pred_fallthru
                _
            $region44: #{speaker_encoder_forward.2} parent=39 // pred_fallthru
              _
            // Predicated region
            $region45: #{speaker_encoder_forward.2} parent=39 // pred_check
              _
            $region46: #{speaker_encoder_forward.2} parent=39 // pred_check_branch
              %211 = sbr.rel target = $region48
            $region47: #{speaker_encoder_forward.2} parent=39 // pred_region
              loop: start=0, step=1, limit=1
              $region49: #{speaker_encoder_forward.2} parent=47 // loop_pre_header
                _
              $region50: #{speaker_encoder_forward.2} parent=47 // loop_header
                %s214 = sphi 0, %s218
                %p215 = scmp.ge.s32.totalorder %s214, 1
                %s219 = sphi %s205, %s205
                %s220 = sphi %s199, %s199
              $region51: #{speaker_encoder_forward.2} parent=47 // loop_header_branch
                %217 = sbr.rel (%p215) target = $region55
              $region52: #{speaker_encoder_forward.2} parent=47 // loop_body
                %v221 = vld [vmem:[%s219] sm:$0xff]
                %222 = vst [vmem:[%s220] sm:$0xff] %v221
                %v223 = vld [vmem:[%s219 + $0x8] sm:$0xff]
                %224 = vst [vmem:[%s220 + $0x8] sm:$0xff] %v223
                %v225 = vld [vmem:[%s219 + $0x20] sm:$0xff]
                %226 = vst [vmem:[%s220 + $0x10] sm:$0xff] %v225
                %v227 = vld [vmem:[%s219 + $0x28] sm:$0xff]
                %228 = vst [vmem:[%s220 + $0x18] sm:$0xff] %v227
                %v229 = vld [vmem:[%s219 + $0x40] sm:$0xff]
                %230 = vst [vmem:[%s220 + $0x20] sm:$0xff] %v229
                %v231 = vld [vmem:[%s219 + $0x48] sm:$0xff]
                %232 = vst [vmem:[%s220 + $0x28] sm:$0xff] %v231
                %v233 = vld [vmem:[%s219 + $0x60] sm:$0xff]
                %234 = vst [vmem:[%s220 + $0x30] sm:$0xff] %v233
                %v235 = vld [vmem:[%s219 + $0x68] sm:$0xff]
                %236 = vst [vmem:[%s220 + $0x38] sm:$0xff] %v235
                %v237 = vld [vmem:[%s219 + $0x80] sm:$0xff]
                %238 = vst [vmem:[%s220 + $0x40] sm:$0xff] %v237
                %v239 = vld [vmem:[%s219 + $0x88] sm:$0xff]
                %240 = vst [vmem:[%s220 + $0x48] sm:$0xff] %v239
                %v241 = vld [vmem:[%s219 + $0xa0] sm:$0xff]
                %242 = vst [vmem:[%s220 + $0x50] sm:$0xff] %v241
                %v243 = vld [vmem:[%s219 + $0xa8] sm:$0xff]
                %244 = vst [vmem:[%s220 + $0x58] sm:$0xff] %v243
                %v245 = vld [vmem:[%s219 + $0xc0] sm:$0xff]
                %246 = vst [vmem:[%s220 + $0x60] sm:$0xff] %v245
                %v247 = vld [vmem:[%s219 + $0xc8] sm:$0xff]
                %248 = vst [vmem:[%s220 + $0x68] sm:$0xff] %v247
                %v249 = vld [vmem:[%s219 + $0xe0] sm:$0xff]
                %250 = vst [vmem:[%s220 + $0x70] sm:$0xff] %v249
                %v251 = vld [vmem:[%s219 + $0xe8] sm:$0xff]
                %252 = vst [vmem:[%s220 + $0x78] sm:$0xff] %v251
              $region53: #{speaker_encoder_forward.2} parent=47 // loop_footer
                %s218 = sadd.s32 1, %s214
              $region54: #{speaker_encoder_forward.2} parent=47 // loop_footer_branch
                %213 = sbr.rel target = $region50
              $region55: #{speaker_encoder_forward.2} parent=47 // loop_exit
                _
            $region48: #{speaker_encoder_forward.2} parent=39 // pred_fallthru
              _
          $region40: #{speaker_encoder_forward.2} parent=35 // pred_fallthru
            _
          %297 = vnop
        $region36: #{speaker_encoder_forward.2} parent=31 // pred_fallthru
          _
      $region32: #{speaker_encoder_forward.2} parent=5 // pred_fallthru
        _
      %p298 = scmp.le.s32.totalorder 1, %s12
      %p299 = scmp.lt.s32.totalorder %s12, 5
      %p300 = pnand %p298, %p299
      %p301 = pneg %p300
      // Predicated region
      $region71: #{speaker_encoder_forward.2} parent=5 // pred_check
        _
      $region72: #{speaker_encoder_forward.2} parent=5 // pred_check_branch
        %303 = sbr.rel (%p300) target = $region74
      $region73: #{speaker_encoder_forward.2} parent=5 // pred_region
        %s304 = ssub.s32 %s12, 1
        %s305 = sand.u32 %s39, 1
        %s306 = sand.u32 %s39, 1
        %s307 = smul.addr %s306, 128
        %s308 = scalar_lea.vmem [#allocation6], %s307
        // Predicated region
        $region75: #{speaker_encoder_forward.2} parent=73 // pred_check
          %p309 = pneg %p52
        $region76: #{speaker_encoder_forward.2} parent=73 // pred_check_branch
          %311 = sbr.rel (%p309) target = $region78
        $region77: #{speaker_encoder_forward.2} parent=73 // pred_region
          _
        $region78: #{speaker_encoder_forward.2} parent=73 // pred_fallthru
          _
        %s312 = sand.u32 %s39, 1
        %s313 = sand.u32 %s39, 1
        %s314 = smul.addr %s313, 128
        %s315 = scalar_lea.vmem [#allocation6], %s314
        %p316 = pneg %p52
        %p317 = pneg %p49
        %p318 = pneg %p73
        %p319 = pneg %p70
        %p320 = pneg %p94
        %p321 = pneg %p91
        %p322 = pneg %p115
        %p323 = pneg %p112
        %p324 = pneg %p136
        %p325 = pneg %p133
        %p326 = pneg %p162
        %p327 = pneg %p159
        %p328 = scmp.lt.s32.totalorder %s21, 1
        %s329 = scalar_select %p328, %s21, 1
        %s330 = smul.addr %s329, 8
        %s331 = scalar_lea.vmem %s5, %s330
        %s332 = smul.u32 8, %s21
        %s333 = smul.u32 2, %s22
        %p334 = scmp.lt.s32.totalorder %s21, 1
        %s335 = scalar_select %p334, %s21, 1
        %s336 = smul.addr %s335, 8
        %s337 = scalar_lea.vmem %s5, %s336
        %p339 = scmp.eq.s32.totalorder %s22, 0
        // Predicated region
        $region79: #{speaker_encoder_forward.2} parent=73 // pred_check
          %p340 = pneg %p339
        $region80: #{speaker_encoder_forward.2} parent=73 // pred_check_branch
          %342 = sbr.rel (%p340) target = $region82
        $region81: #{speaker_encoder_forward.2} parent=73 // pred_region
          %vm343 = vcmask 7168
          %344 = vst.msk [vmem:[#allocation2] sm:$0xff] %vm343, -1e+30
          %345 = vst.msk [vmem:[#allocation3] sm:$0xff] %vm343, 0.0
          %346 = vst [vmem:[#allocation4] sm:$0xff] 0.0
        $region82: #{speaker_encoder_forward.2} parent=73 // pred_fallthru
          _
        %v347 = vld [vmem:[%s308] sm:$0xff]
        %v348 = vld [vmem:[%s308 + $0x8] sm:$0xff]
        %v349 = vld [vmem:[%s308 + $0x10] sm:$0xff]
        %v350 = vld [vmem:[%s308 + $0x18] sm:$0xff]
        %v351 = vld [vmem:[%s308 + $0x20] sm:$0xff]
        %v352 = vld [vmem:[%s308 + $0x28] sm:$0xff]
        %v353 = vld [vmem:[%s308 + $0x30] sm:$0xff]
        %v354 = vld [vmem:[%s308 + $0x38] sm:$0xff]
        %v355 = vld [vmem:[%s308 + $0x40] sm:$0xff]
        %v356 = vld [vmem:[%s308 + $0x48] sm:$0xff]
        %v357 = vld [vmem:[%s308 + $0x50] sm:$0xff]
        %v358 = vld [vmem:[%s308 + $0x58] sm:$0xff]
        %v359 = vld [vmem:[%s308 + $0x60] sm:$0xff]
        %v360 = vld [vmem:[%s308 + $0x68] sm:$0xff]
        %v361 = vld [vmem:[%s308 + $0x70] sm:$0xff]
        %v362 = vld [vmem:[%s308 + $0x78] sm:$0xff]
        %v363 = vpack.c.bf16 %v348, %v347
        %v364 = vpack.c.bf16 %v350, %v349
        %v365 = vpack.c.bf16 %v352, %v351
        %v366 = vpack.c.bf16 %v354, %v353
        %v367 = vpack.c.bf16 %v356, %v355
        %v368 = vpack.c.bf16 %v358, %v357
        %v369 = vpack.c.bf16 %v360, %v359
        %v370 = vpack.c.bf16 %v362, %v361
        %v371 = vld [vmem:[%s1] sm:$0xf]
        %v372 = vld [vmem:[%s1 + $0x4] sm:$0xf]
        %v373 = vld [vmem:[%s1 + $0x8] sm:$0xf]
        %v374 = vld [vmem:[%s1 + $0xc] sm:$0xf]
        %v375 = vld [vmem:[%s1 + $0x10] sm:$0xf]
        %v376 = vld [vmem:[%s1 + $0x14] sm:$0xf]
        %v377 = vld [vmem:[%s1 + $0x18] sm:$0xf]
        %v378 = vld [vmem:[%s1 + $0x1c] sm:$0xf]
        %v379 = vld [vmem:[%s1 + $0x20] sm:$0xf]
        %v380 = vld [vmem:[%s1 + $0x24] sm:$0xf]
        %v381 = vld [vmem:[%s1 + $0x28] sm:$0xf]
        %v382 = vld [vmem:[%s1 + $0x2c] sm:$0xf]
        %v383 = vld [vmem:[%s1 + $0x30] sm:$0xf]
        %v384 = vld [vmem:[%s1 + $0x34] sm:$0xf]
        %v385 = vld [vmem:[%s1 + $0x38] sm:$0xf]
        %v386 = vld [vmem:[%s1 + $0x3c] sm:$0xf]
        %v387 = vld [vmem:[%s2] sm:$0x1]
        %v389 = vlaneseq
        %v390 = vshrl.u32 %v389, 7
        %v391 = vsub.s32 0, %v390
        %v392 = vrot.slane %v387, %v391
        %v410 = vunpack.c.l.b16 %v371
        %v411 = vunpack.c.l.b16 %v372
        %v412 = vunpack.c.l.b16 %v373
        %v413 = vunpack.c.l.b16 %v374
        %v414 = vunpack.c.l.b16 %v375
        %v415 = vunpack.c.l.b16 %v376
        %v416 = vunpack.c.l.b16 %v377
        %v417 = vunpack.c.l.b16 %v378
        %v418 = vunpack.c.l.b16 %v379
        %v419 = vunpack.c.l.b16 %v380
        %v420 = vunpack.c.l.b16 %v381
        %v421 = vunpack.c.l.b16 %v382
        %v422 = vunpack.c.l.b16 %v383
        %v423 = vunpack.c.l.b16 %v384
        %v424 = vunpack.c.l.b16 %v385
        %v425 = vunpack.c.l.b16 %v386
        %v426 = vpack.c.b16 %v411, %v410
        %v427 = vpack.c.b16 %v413, %v412
        %v428 = vpack.c.b16 %v415, %v414
        %v429 = vpack.c.b16 %v417, %v416
        %v430 = vpack.c.b16 %v419, %v418
        %v431 = vpack.c.b16 %v421, %v420
        %v432 = vpack.c.b16 %v423, %v422
        %v433 = vpack.c.b16 %v425, %v424
        %442 = vmatprep.subr.bf16.mxu0 0
        %443 = vmatpush1.bf16.msra.mxu0 %v426
        %444 = vmatprep.subr.bf16.mxu0 0
        %445 = vmatpush1.bf16.msra.mxu0 %v427
        %446 = vmatprep.subr.bf16.mxu0 0
        %447 = vmatpush1.bf16.msra.mxu0 %v428
        %448 = vmatprep.subr.bf16.mxu0 0
        %449 = vmatpush1.bf16.msra.mxu0 %v429
        %450 = vmatprep.subr.bf16.mxu0 0
        %451 = vmatpush1.bf16.msra.mxu0 %v430
        %452 = vmatprep.subr.bf16.mxu0 0
        %453 = vmatpush1.bf16.msra.mxu0 %v431
        %454 = vmatprep.subr.bf16.mxu0 0
        %455 = vmatpush1.bf16.msra.mxu0 %v432
        %456 = vmatprep.subr.bf16.mxu0 0
        %457 = vmatpush1.bf16.msra.mxu0 %v433
        %458 = vmatprep.subr.bf16.mxu0 0
        %459 = vmatpush1.bf16.msra.mxu0 0
        %460 = vmatprep.subr.bf16.mxu0 0
        %461 = vmatpush1.bf16.msra.mxu0 0
        %462 = vmatprep.subr.bf16.mxu0 0
        %463 = vmatpush1.bf16.msra.mxu0 0
        %464 = vmatprep.subr.bf16.mxu0 0
        %465 = vmatpush1.bf16.msra.mxu0 0
        %466 = vmatprep.subr.bf16.mxu0 0
        %467 = vmatpush1.bf16.msra.mxu0 0
        %468 = vmatprep.subr.bf16.mxu0 0
        %469 = vmatpush1.bf16.msra.mxu0 0
        %470 = vmatprep.subr.bf16.mxu0 0
        %471 = vmatpush1.bf16.msra.mxu0 0
        %472 = vmatprep.subr.bf16.mxu0 0
        %473 = vmatpush1.bf16.msra.mxu0 0
        %474 = vmatprep.mubr.bf16.mxu0 0
        %475 = vmatmul.mubr.bf16.gmra.mrb[0].mxu0 %v363
        %v476 = vpop.f32.mrb[0].mxu0
        %v477 = vadd.f32 %v392, %v476
        %v478 = vpop.f32.mrb[0].mxu0
        %v479 = vpop.f32.mrb[0].mxu0
        %v480 = vadd.f32 %v392, %v479
        %v481 = vpop.f32.mrb[0].mxu0
        %482 = vmatprep.mubr.bf16.mxu0 0
        %483 = vmatmul.mubr.bf16.gmra.mrb[0].mxu0 %v364
        %v484 = vpop.f32.mrb[0].mxu0
        %v485 = vadd.f32 %v392, %v484
        %v486 = vpop.f32.mrb[0].mxu0
        %v487 = vpop.f32.mrb[0].mxu0
        %v488 = vadd.f32 %v392, %v487
        %v489 = vpop.f32.mrb[0].mxu0
        %490 = vmatprep.mubr.bf16.mxu0 0
        %491 = vmatmul.mubr.bf16.gmra.mrb[0].mxu0 %v365
        %v492 = vpop.f32.mrb[0].mxu0
        %v493 = vadd.f32 %v392, %v492
        %v494 = vpop.f32.mrb[0].mxu0
        %v495 = vpop.f32.mrb[0].mxu0
        %v496 = vadd.f32 %v392, %v495
        %v497 = vpop.f32.mrb[0].mxu0
        %498 = vmatprep.mubr.bf16.mxu0 0
        %499 = vmatmul.mubr.bf16.gmra.mrb[0].mxu0 %v366
        %v500 = vpop.f32.mrb[0].mxu0
        %v501 = vadd.f32 %v392, %v500
        %v502 = vpop.f32.mrb[0].mxu0
        %v503 = vpop.f32.mrb[0].mxu0
        %v504 = vadd.f32 %v392, %v503
        %v505 = vpop.f32.mrb[0].mxu0
        %506 = vmatprep.mubr.bf16.mxu0 0
        %507 = vmatmul.mubr.bf16.gmra.mrb[0].mxu0 %v367
        %v508 = vpop.f32.mrb[0].mxu0
        %v509 = vadd.f32 %v392, %v508
        %v510 = vpop.f32.mrb[0].mxu0
        %v511 = vpop.f32.mrb[0].mxu0
        %v512 = vadd.f32 %v392, %v511
        %v513 = vpop.f32.mrb[0].mxu0
        %514 = vmatprep.mubr.bf16.mxu0 0
        %515 = vmatmul.mubr.bf16.gmra.mrb[0].mxu0 %v368
        %v516 = vpop.f32.mrb[0].mxu0
        %v517 = vadd.f32 %v392, %v516
        %v518 = vpop.f32.mrb[0].mxu0
        %v519 = vpop.f32.mrb[0].mxu0
        %v520 = vadd.f32 %v392, %v519
        %v521 = vpop.f32.mrb[0].mxu0
        %522 = vmatprep.mubr.bf16.mxu0 0
        %523 = vmatmul.mubr.bf16.gmra.mrb[0].mxu0 %v369
        %v524 = vpop.f32.mrb[0].mxu0
        %v525 = vadd.f32 %v392, %v524
        %v526 = vpop.f32.mrb[0].mxu0
        %v527 = vpop.f32.mrb[0].mxu0
        %v528 = vadd.f32 %v392, %v527
        %v529 = vpop.f32.mrb[0].mxu0
        %530 = vmatprep.mubr.bf16.mxu0 0
        %531 = vmatmul.mubr.bf16.gmra.mrb[0].mxu0 %v370
        %v532 = vpop.f32.mrb[0].mxu0
        %v533 = vadd.f32 %v392, %v532
        %v534 = vpop.f32.mrb[0].mxu0
        %v535 = vpop.f32.mrb[0].mxu0
        %v536 = vadd.f32 %v392, %v535
        %v537 = vpop.f32.mrb[0].mxu0
        %538 = vdwg.mxu0
        %v539 = vtanh.pop %v477
        %v540 = vtanh.pop %v480
        %v541 = vtanh.pop %v485
        %v542 = vtanh.pop %v488
        %v543 = vtanh.pop %v493
        %v544 = vtanh.pop %v496
        %v545 = vtanh.pop %v501
        %v546 = vtanh.pop %v504
        %v547 = vtanh.pop %v509
        %v548 = vtanh.pop %v512
        %v549 = vtanh.pop %v517
        %v550 = vtanh.pop %v520
        %v551 = vtanh.pop %v525
        %v552 = vtanh.pop %v528
        %v553 = vtanh.pop %v533
        %v554 = vtanh.pop %v536
        %v555 = vld [vmem:[%s3] sm:$0x1]
        %v557 = vlaneseq
        %v558 = vshrl.u32 %v557, 7
        %v559 = vsub.s32 0, %v558
        %v560 = vrot.slane %v555, %v559
        %v562 = vmul.f32 %v539, %v560
        %v563 = vmul.f32 %v540, %v560
        %v564 = vmul.f32 %v541, %v560
        %v565 = vmul.f32 %v542, %v560
        %v566 = vmul.f32 %v543, %v560
        %v567 = vmul.f32 %v544, %v560
        %v568 = vmul.f32 %v545, %v560
        %v569 = vmul.f32 %v546, %v560
        %v570 = vmul.f32 %v547, %v560
        %v571 = vmul.f32 %v548, %v560
        %v572 = vmul.f32 %v549, %v560
        %v573 = vmul.f32 %v550, %v560
        %v574 = vmul.f32 %v551, %v560
        %v575 = vmul.f32 %v552, %v560
        %v576 = vmul.f32 %v553, %v560
        %v577 = vmul.f32 %v554, %v560
        %578 = vadd.xlane.f32.xlu0 %v562
        %v579 = vpop.xlane.xlu0 %578
        %580 = vadd.xlane.f32.xlu0 %v563
        %v581 = vpop.xlane.xlu0 %580
        %582 = vadd.xlane.f32.xlu0 %v564
        %v583 = vpop.xlane.xlu0 %582
        %584 = vadd.xlane.f32.xlu0 %v565
        %v585 = vpop.xlane.xlu0 %584
        %586 = vadd.xlane.f32.xlu0 %v566
        %v587 = vpop.xlane.xlu0 %586
        %588 = vadd.xlane.f32.xlu0 %v567
        %v589 = vpop.xlane.xlu0 %588
        %590 = vadd.xlane.f32.xlu0 %v568
        %v591 = vpop.xlane.xlu0 %590
        %592 = vadd.xlane.f32.xlu0 %v569
        %v593 = vpop.xlane.xlu0 %592
        %594 = vadd.xlane.f32.xlu0 %v570
        %v595 = vpop.xlane.xlu0 %594
        %596 = vadd.xlane.f32.xlu0 %v571
        %v597 = vpop.xlane.xlu0 %596
        %598 = vadd.xlane.f32.xlu0 %v572
        %v599 = vpop.xlane.xlu0 %598
        %600 = vadd.xlane.f32.xlu0 %v573
        %v601 = vpop.xlane.xlu0 %600
        %602 = vadd.xlane.f32.xlu0 %v574
        %v603 = vpop.xlane.xlu0 %602
        %604 = vadd.xlane.f32.xlu0 %v575
        %v605 = vpop.xlane.xlu0 %604
        %606 = vadd.xlane.f32.xlu0 %v576
        %v607 = vpop.xlane.xlu0 %606
        %608 = vadd.xlane.f32.xlu0 %v577
        %v609 = vpop.xlane.xlu0 %608
        %s610 = sld [smem:[#allocation5]]
        %v611 = vstv %s610
        %v612 = vadd.f32 %v579, %v611
        %v613 = vadd.f32 %v581, %v611
        %v614 = vadd.f32 %v583, %v611
        %v615 = vadd.f32 %v585, %v611
        %v616 = vadd.f32 %v587, %v611
        %v617 = vadd.f32 %v589, %v611
        %v618 = vadd.f32 %v591, %v611
        %v619 = vadd.f32 %v593, %v611
        %v620 = vadd.f32 %v595, %v611
        %v621 = vadd.f32 %v597, %v611
        %v622 = vadd.f32 %v599, %v611
        %v623 = vadd.f32 %v601, %v611
        %v624 = vadd.f32 %v603, %v611
        %v625 = vadd.f32 %v605, %v611
        %v626 = vadd.f32 %v607, %v611
        %v627 = vadd.f32 %v609, %v611
        %s628 = smul.u32 %s22, 16
        %v629 = vlaneseq
        %v630 = vand.u32 %v629, 127
        %v631 = vstv %s628
        %v632 = vadd.s32 %v631, %v630
        %vm633 = vcmp.lt.s32.totalorder %v632, 20
        %v650 = vlaneseq
        %v651 = vshrl.u32 %v650, 7
        %v652 = vsub.s32 %v630, %v651
        %v653 = vrot.slane %v612, %v652
        %v654 = vadd.s32 %v630, 4294967288
        %v655 = vlaneseq
        %v656 = vshrl.u32 %v655, 7
        %v657 = vsub.s32 %v654, %v656
        %v658 = vrot.slane %v613, %v657
        %vm659 = vcmask 130112
        %v660 = vsel %vm659, %v658, %v653
        %v661 = vlaneseq
        %v662 = vshrl.u32 %v661, 7
        %v663 = vsub.s32 %v630, %v662
        %v664 = vrot.slane %v614, %v663
        %v665 = vlaneseq
        %v666 = vshrl.u32 %v665, 7
        %v667 = vsub.s32 %v654, %v666
        %v668 = vrot.slane %v615, %v667
        %v669 = vsel %vm659, %v668, %v664
        %v670 = vlaneseq
        %v671 = vshrl.u32 %v670, 7
        %v672 = vsub.s32 %v630, %v671
        %v673 = vrot.slane %v616, %v672
        %v674 = vlaneseq
        %v675 = vshrl.u32 %v674, 7
        %v676 = vsub.s32 %v654, %v675
        %v677 = vrot.slane %v617, %v676
        %v678 = vsel %vm659, %v677, %v673
        %v679 = vlaneseq
        %v680 = vshrl.u32 %v679, 7
        %v681 = vsub.s32 %v630, %v680
        %v682 = vrot.slane %v618, %v681
        %v683 = vlaneseq
        %v684 = vshrl.u32 %v683, 7
        %v685 = vsub.s32 %v654, %v684
        %v686 = vrot.slane %v619, %v685
        %v687 = vsel %vm659, %v686, %v682
        %v688 = vlaneseq
        %v689 = vshrl.u32 %v688, 7
        %v690 = vsub.s32 %v630, %v689
        %v691 = vrot.slane %v620, %v690
        %v692 = vlaneseq
        %v693 = vshrl.u32 %v692, 7
        %v694 = vsub.s32 %v654, %v693
        %v695 = vrot.slane %v621, %v694
        %v696 = vsel %vm659, %v695, %v691
        %v697 = vlaneseq
        %v698 = vshrl.u32 %v697, 7
        %v699 = vsub.s32 %v630, %v698
        %v700 = vrot.slane %v622, %v699
        %v701 = vlaneseq
        %v702 = vshrl.u32 %v701, 7
        %v703 = vsub.s32 %v654, %v702
        %v704 = vrot.slane %v623, %v703
        %v705 = vsel %vm659, %v704, %v700
        %v706 = vlaneseq
        %v707 = vshrl.u32 %v706, 7
        %v708 = vsub.s32 %v630, %v707
        %v709 = vrot.slane %v624, %v708
        %v710 = vlaneseq
        %v711 = vshrl.u32 %v710, 7
        %v712 = vsub.s32 %v654, %v711
        %v713 = vrot.slane %v625, %v712
        %v714 = vsel %vm659, %v713, %v709
        %v715 = vlaneseq
        %v716 = vshrl.u32 %v715, 7
        %v717 = vsub.s32 %v630, %v716
        %v718 = vrot.slane %v626, %v717
        %v719 = vlaneseq
        %v720 = vshrl.u32 %v719, 7
        %v721 = vsub.s32 %v654, %v720
        %v722 = vrot.slane %v627, %v721
        %v723 = vsel %vm659, %v722, %v718
        %vm724 = vcmask 1041409
        %v725 = vsel %vm724, %v669, %v660
        %vm726 = vcmask 1042434
        %v727 = vsel %vm726, %v678, %v725
        %vm728 = vcmask 1043459
        %v729 = vsel %vm728, %v687, %v727
        %vm730 = vcmask 1044484
        %v731 = vsel %vm730, %v696, %v729
        %vm732 = vcmask 1045509
        %v733 = vsel %vm732, %v705, %v731
        %vm734 = vcmask 1046534
        %v735 = vsel %vm734, %v714, %v733
        %vm736 = vcmask 1047559
        %v737 = vsel %vm736, %v723, %v735
        %v739 = vsel %vm633, %v737, -1e+30
        %v740 = vld [vmem:[#allocation2] sm:$0xff]
        %vm741 = vcmask 130048
        %v742 = vsel %vm741, %v739, -inf
        %743 = vmax.xlane.f32.xlu0 %v742
        %v744 = vpop.xlane.xlu0 %743
        %v745 = vmax.f32 %v740, %v744
        %v746 = vsub.f32 %v740, %v745
        %v747 = vmul.f32 %v746, 1.442695
        %v748 = vpow.pop %v747
        %750 = vset.pattern.permute.xlu0 0
        %751 = vperm.xlu0 %750, %v745
        %v752 = vpop.permute.xlu0 %751
        %v754 = vsub.f32 %v739, %v752
        %v755 = vmul.f32 %v754, 1.442695
        %v756 = vpow.pop %v755
        %v757 = vld [vmem:[#allocation3] sm:$0xff]
        %v758 = vmul.f32 %v748, %v757
        %v759 = vsel %vm741, %v756, 0.0
        %760 = vadd.xlane.f32.xlu0 %v759
        %v761 = vpop.xlane.xlu0 %760
        %v762 = vadd.f32 %v758, %v761
        %vm763 = vcmask 7168
        %764 = vst.msk [vmem:[#allocation3] sm:$0xff] %vm763, %v762
        %v765 = vlaneseq
        %v766 = vshrl.u32 %v765, 7
        %v767 = vsub.s32 0, %v766
        %v768 = vrot.slane %v756, %v767
        %770 = vbcast.lane.b32.xlu0 %v768, 256
        %v771 = vpop.permute.xlu0 %770
        %s773 = sor.u32 256, 8
        %774 = vbcast.lane.b32.xlu0 %v768, %s773
        %v775 = vpop.permute.xlu0 %774
        %v776 = vlaneseq
        %v777 = vshrl.u32 %v776, 7
        %v778 = vsub.s32 1, %v777
        %v779 = vrot.slane %v756, %v778
        %781 = vbcast.lane.b32.xlu0 %v779, 256
        %v782 = vpop.permute.xlu0 %781
        %s784 = sor.u32 256, 8
        %785 = vbcast.lane.b32.xlu0 %v779, %s784
        %v786 = vpop.permute.xlu0 %785
        %v787 = vlaneseq
        %v788 = vshrl.u32 %v787, 7
        %v789 = vsub.s32 2, %v788
        %v790 = vrot.slane %v756, %v789
        %792 = vbcast.lane.b32.xlu0 %v790, 256
        %v793 = vpop.permute.xlu0 %792
        %s795 = sor.u32 256, 8
        %796 = vbcast.lane.b32.xlu0 %v790, %s795
        %v797 = vpop.permute.xlu0 %796
        %v798 = vlaneseq
        %v799 = vshrl.u32 %v798, 7
        %v800 = vsub.s32 3, %v799
        %v801 = vrot.slane %v756, %v800
        %803 = vbcast.lane.b32.xlu0 %v801, 256
        %v804 = vpop.permute.xlu0 %803
        %s806 = sor.u32 256, 8
        %807 = vbcast.lane.b32.xlu0 %v801, %s806
        %v808 = vpop.permute.xlu0 %807
        %v809 = vlaneseq
        %v810 = vshrl.u32 %v809, 7
        %v811 = vsub.s32 4, %v810
        %v812 = vrot.slane %v756, %v811
        %814 = vbcast.lane.b32.xlu0 %v812, 256
        %v815 = vpop.permute.xlu0 %814
        %s817 = sor.u32 256, 8
        %818 = vbcast.lane.b32.xlu0 %v812, %s817
        %v819 = vpop.permute.xlu0 %818
        %v820 = vlaneseq
        %v821 = vshrl.u32 %v820, 7
        %v822 = vsub.s32 5, %v821
        %v823 = vrot.slane %v756, %v822
        %825 = vbcast.lane.b32.xlu0 %v823, 256
        %v826 = vpop.permute.xlu0 %825
        %s828 = sor.u32 256, 8
        %829 = vbcast.lane.b32.xlu0 %v823, %s828
        %v830 = vpop.permute.xlu0 %829
        %v831 = vlaneseq
        %v832 = vshrl.u32 %v831, 7
        %v833 = vsub.s32 6, %v832
        %v834 = vrot.slane %v756, %v833
        %836 = vbcast.lane.b32.xlu0 %v834, 256
        %v837 = vpop.permute.xlu0 %836
        %s839 = sor.u32 256, 8
        %840 = vbcast.lane.b32.xlu0 %v834, %s839
        %v841 = vpop.permute.xlu0 %840
        %v842 = vlaneseq
        %v843 = vshrl.u32 %v842, 7
        %v844 = vsub.s32 7, %v843
        %v845 = vrot.slane %v756, %v844
        %847 = vbcast.lane.b32.xlu0 %v845, 256
        %v848 = vpop.permute.xlu0 %847
        %s850 = sor.u32 256, 8
        %851 = vbcast.lane.b32.xlu0 %v845, %s850
        %v852 = vpop.permute.xlu0 %851
        %v853 = vmul.f32 %v771, %v347
        %v854 = vmul.f32 %v775, %v348
        %v855 = vmul.f32 %v782, %v349
        %v856 = vmul.f32 %v786, %v350
        %v857 = vmul.f32 %v793, %v351
        %v858 = vmul.f32 %v797, %v352
        %v859 = vmul.f32 %v804, %v353
        %v860 = vmul.f32 %v808, %v354
        %v861 = vmul.f32 %v815, %v355
        %v862 = vmul.f32 %v819, %v356
        %v863 = vmul.f32 %v826, %v357
        %v864 = vmul.f32 %v830, %v358
        %v865 = vmul.f32 %v837, %v359
        %v866 = vmul.f32 %v841, %v360
        %v867 = vmul.f32 %v848, %v361
        %v868 = vmul.f32 %v852, %v362
        %v869 = vadd.f32 %v853, %v854
        %v870 = vrot.slane %v869, 4
        %v871 = vadd.f32 %v869, %v870
        %v872 = vrot.slane %v871, 2
        %v873 = vadd.f32 %v871, %v872
        %v874 = vrot.slane %v873, 1
        %v875 = vadd.f32 %v873, %v874
        %v876 = vadd.f32 %v855, %v856
        %v877 = vrot.slane %v876, 4
        %v878 = vadd.f32 %v876, %v877
        %v879 = vrot.slane %v878, 2
        %v880 = vadd.f32 %v878, %v879
        %v881 = vrot.slane %v880, 1
        %v882 = vadd.f32 %v880, %v881
        %v883 = vadd.f32 %v857, %v858
        %v884 = vrot.slane %v883, 4
        %v885 = vadd.f32 %v883, %v884
        %v886 = vrot.slane %v885, 2
        %v887 = vadd.f32 %v885, %v886
        %v888 = vrot.slane %v887, 1
        %v889 = vadd.f32 %v887, %v888
        %v890 = vadd.f32 %v859, %v860
        %v891 = vrot.slane %v890, 4
        %v892 = vadd.f32 %v890, %v891
        %v893 = vrot.slane %v892, 2
        %v894 = vadd.f32 %v892, %v893
        %v895 = vrot.slane %v894, 1
        %v896 = vadd.f32 %v894, %v895
        %v897 = vadd.f32 %v861, %v862
        %v898 = vrot.slane %v897, 4
        %v899 = vadd.f32 %v897, %v898
        %v900 = vrot.slane %v899, 2
        %v901 = vadd.f32 %v899, %v900
        %v902 = vrot.slane %v901, 1
        %v903 = vadd.f32 %v901, %v902
        %v904 = vadd.f32 %v863, %v864
        %v905 = vrot.slane %v904, 4
        %v906 = vadd.f32 %v904, %v905
        %v907 = vrot.slane %v906, 2
        %v908 = vadd.f32 %v906, %v907
        %v909 = vrot.slane %v908, 1
        %v910 = vadd.f32 %v908, %v909
        %v911 = vadd.f32 %v865, %v866
        %v912 = vrot.slane %v911, 4
        %v913 = vadd.f32 %v911, %v912
        %v914 = vrot.slane %v913, 2
        %v915 = vadd.f32 %v913, %v914
        %v916 = vrot.slane %v915, 1
        %v917 = vadd.f32 %v915, %v916
        %v918 = vadd.f32 %v867, %v868
        %v919 = vrot.slane %v918, 4
        %v920 = vadd.f32 %v918, %v919
        %v921 = vrot.slane %v920, 2
        %v922 = vadd.f32 %v920, %v921
        %v923 = vrot.slane %v922, 1
        %v924 = vadd.f32 %v922, %v923
        %v925 = vld [vmem:[#allocation4] sm:$0xff]
        %927 = vset.pattern.permute.xlu0 0
        %928 = vperm.xlu0 %927, %v748
        %v929 = vpop.permute.xlu0 %928
        %v931 = vmul.f32 %v929, %v925
        %v940 = vsel %vm724, %v882, %v875
        %v941 = vsel %vm726, %v889, %v940
        %v942 = vsel %vm728, %v896, %v941
        %v943 = vsel %vm730, %v903, %v942
        %v944 = vsel %vm732, %v910, %v943
        %v945 = vsel %vm734, %v917, %v944
        %v946 = vsel %vm736, %v924, %v945
        %v948 = vadd.f32 %v931, %v946
        %949 = vst [vmem:[#allocation4] sm:$0xff] %v948
        %950 = vst.msk [vmem:[#allocation2] sm:$0xff] %vm763, %v745
        %p951 = scmp.eq.s32.totalorder %s22, 1
        // Predicated region
        $region83: #{speaker_encoder_forward.2} parent=73 // pred_check
          %p952 = pneg %p951
        $region84: #{speaker_encoder_forward.2} parent=73 // pred_check_branch
          %954 = sbr.rel (%p952) target = $region86
        $region85: #{speaker_encoder_forward.2} parent=73 // pred_region
          %v955 = vld [vmem:[#allocation3] sm:$0xff]
          %v956 = vrcp.pop %v955
          %v957 = vld [vmem:[#allocation4] sm:$0xff]
          %959 = vset.pattern.permute.xlu0 0
          %960 = vperm.xlu0 %959, %v956
          %v961 = vpop.permute.xlu0 %960
          %v963 = vmul.f32 %v957, %v961
          %964 = vst [vmem:[%s337] sm:$0xff] %v963
        $region86: #{speaker_encoder_forward.2} parent=73 // pred_fallthru
          _
        %p965 = scmp.lt.s32.totalorder %s21, 1
        %s966 = scalar_select %p965, %s21, 1
        %s967 = smul.addr %s966, 8
        %s968 = scalar_lea.vmem %s5, %s967
        // Predicated region
        $region87: #{speaker_encoder_forward.2} parent=73 // pred_check
          %p969 = pneg %p159
        $region88: #{speaker_encoder_forward.2} parent=73 // pred_check_branch
          %971 = sbr.rel (%p969) target = $region90
        $region89: #{speaker_encoder_forward.2} parent=73 // pred_region
          _
        $region90: #{speaker_encoder_forward.2} parent=73 // pred_fallthru
          _
      $region74: #{speaker_encoder_forward.2} parent=5 // pred_fallthru
        _
      %p972 = scmp.le.s32.totalorder 2, %s12
      // Predicated region
      $region91: #{speaker_encoder_forward.2} parent=5 // pred_check
        %p973 = pneg %p972
      $region92: #{speaker_encoder_forward.2} parent=5 // pred_check_branch
        %975 = sbr.rel (%p973) target = $region94
      $region93: #{speaker_encoder_forward.2} parent=5 // pred_region
        %s976 = ssub.s32 %s12, 2
        // Predicated region
        $region95: #{speaker_encoder_forward.2} parent=93 // pred_check
          %p977 = pneg %p165
        $region96: #{speaker_encoder_forward.2} parent=93 // pred_check_branch
          %979 = sbr.rel (%p977) target = $region98
        $region97: #{speaker_encoder_forward.2} parent=93 // pred_region
          %p980 = scmp.lt.s32.totalorder %s23, 1
          %s981 = scalar_select %p980, %s23, 1
          %s982 = smul.addr %s981, 8
          %s983 = scalar_lea.vmem %s5, %s982
        $region98: #{speaker_encoder_forward.2} parent=93 // pred_fallthru
          _
      $region94: #{speaker_encoder_forward.2} parent=5 // pred_fallthru
        _
    $region6: #{speaker_encoder_forward.2} parent=1 // loop_footer
      %s16 = sadd.s32 1, %s12
    $region7: #{speaker_encoder_forward.2} parent=1 // loop_footer_branch
      %11 = sbr.rel target = $region3
    $region8: #{speaker_encoder_forward.2} parent=1 // loop_exit
      _

</llo_original>
